<compile_context>
chip_gen: v5e
topology: v5e:2x2
jax: 0.10.0
libtpu: 0.0.40
codegen_flags: <defaults>
</compile_context>

<pallas_src>
from collections import namedtuple

import numpy as np
import jax
import jax.numpy as jnp
from jax.experimental import pallas as pl
from jax.experimental.pallas import tpu as pltpu

# ------------------------- synthetic SMPL sizes -------------------------
V = 512                        # number of mesh vertices (synthetic, small)
NUM_J = 24                     # SMPL joints
NUM_BETAS = 10                 # shape coefficients
POSE_BASIS = (NUM_J - 1) * 9   # 207 pose-blendshape basis
V3 = V * 3
KB = 224                       # padded blend basis rows: 10 + 207 + 7 zeros

SMPL_PARENTS = np.array(
    [-1, 0, 0, 0, 1, 2, 3, 4, 5, 6, 7, 8, 9, 9, 9, 12, 13, 14,
     16, 17, 18, 19, 20, 21], dtype=np.int64)

ModelOutput = namedtuple(
    'ModelOutput',
    ['vertices', 'joints_t', 'joints', 'rot_mats',
     'swing_rotmat', 'twist_rotmat', 'twist_angle'])


# ----------------------------- Pallas kernel -----------------------------

def _lbs_fused_kernel(feat_ref, basis_ref, vtemp_ref, arows_ref, wt_ref,
                      verts_ref):
    """Fused blendshapes + LBS skinning.

    Layouts (all lane-dense, coordinate-major flat index c*V + v):
      feat   (B, KB)      bf16   [betas | pose_feature | 0-pad]
      basis  (KB, 3V)     bf16   [shapedirs ; posedirs ; 0-pad]
      vtemp  (1, 3V)      f32    template (kept f32 for precision)
      arows  (12B, 24)    f32    row (4c+k)*B + b = A[b, j, c, k] over j
      wt     (24, V)      f32    lbs_weights^T
      verts  (B, 3V)      f32    output, row b, lanes c*V + v
    """
    B = feat_ref.shape[0]

    # 1) shape + pose blendshapes in ONE bf16 MXU matmul (f32 accumulate),
    #    then f32 template add -> posed rest vertices, never leaves VMEM.
    off = jnp.dot(feat_ref[...], basis_ref[...],
                  preferred_element_type=jnp.float32)            # (B, 3V)
    vp = vtemp_ref[...] + off                                    # (B, 3V)

    # 2) per-vertex transform coefficients for the whole batch:
    #    T[(4c+k)*B + b, v] = sum_j A[b,j,c,k] * w[v,j]   (f32 MXU matmul)
    t_all = jnp.dot(arows_ref[...], wt_ref[...],
                    preferred_element_type=jnp.float32)          # (12B, V)

    # 3) skinning apply, batch-vectorized; V is a multiple of 128 so the
    #    coordinate slices land on vreg lane boundaries.
    vx = vp[:, 0 * V:1 * V]                                      # (B, V)
    vy = vp[:, 1 * V:2 * V]
    vz = vp[:, 2 * V:3 * V]
    for c in range(3):                       # 3 static iterations only
        g = 4 * c
        rx = t_all[(g + 0) * B:(g + 1) * B, :]                   # (B, V)
        ry = t_all[(g + 1) * B:(g + 2) * B, :]
        rz = t_all[(g + 2) * B:(g + 3) * B, :]
        tr = t_all[(g + 3) * B:(g + 4) * B, :]
        # lane-dense store (V = 4 full 128-lane tiles)
        verts_ref[:, c * V:(c + 1) * V] = rx * vx + ry * vy + rz * vz + tr


def lbs_fused(feat_bf16, basis_bf16, v_template_cv, a_rows, lbs_weights_T):
    B = feat_bf16.shape[0]
    return pl.pallas_call(
        _lbs_fused_kernel,
        grid=(1,),
        in_specs=[
            pl.BlockSpec((B, KB), lambda i: (0, 0)),
            pl.BlockSpec((KB, V3), lambda i: (0, 0)),
            pl.BlockSpec((1, V3), lambda i: (0, 0)),
            pl.BlockSpec((12 * B, NUM_J), lambda i: (0, 0)),
            pl.BlockSpec((NUM_J, V), lambda i: (0, 0)),
        ],
        out_specs=pl.BlockSpec((B, V3), lambda i: (0, 0)),
        out_shape=jax.ShapeDtypeStruct((B, V3), jnp.float32),
        compiler_params=pltpu.CompilerParams(
            dimension_semantics=("arbitrary",)),
    )(feat_bf16, basis_bf16, v_template_cv, a_rows, lbs_weights_T)


# --------------------------- plain-JAX glue (small) -------------------------

def batch_rodrigues(rot_vecs):
    """Axis-angle (N,3) -> rotation matrices (N,3,3)."""
    angle = jnp.linalg.norm(rot_vecs + 1e-8, axis=1, keepdims=True)
    rot_dir = rot_vecs / angle
    cos = jnp.cos(angle)[:, None]
    sin = jnp.sin(angle)[:, None]
    rx, ry, rz = jnp.split(rot_dir, 3, axis=1)
    zeros = jnp.zeros_like(rx)
    K = jnp.concatenate(
        [zeros, -rz, ry, rz, zeros, -rx, -ry, rx, zeros], axis=1
    ).reshape(-1, 3, 3)
    ident = jnp.eye(3, dtype=rot_vecs.dtype)[None]
    return ident + sin * K + (1.0 - cos) * jnp.matmul(K, K)


def _compute_levels(parents):
    """Group joints by kinematic-tree depth for batched chain composition."""
    depth = np.zeros(len(parents), dtype=np.int64)
    for i in range(1, len(parents)):
        depth[i] = depth[parents[i]] + 1
    levels = []
    for d in range(1, int(depth.max()) + 1):
        idx = np.nonzero(depth == d)[0]
        levels.append((idx, parents[idx]))
    return levels


def batch_rigid_transform(rot_mats, joints, parents, levels):
    """rot_mats (B,J,3,3), joints (B,J,3) -> posed joints (B,J,3), rel 4x4 (B,J,4,4)."""
    B, J = joints.shape[:2]
    joints_e = joints[..., None]                               # (B,J,3,1)
    rel_joints = joints_e.at[:, 1:].set(
        joints_e[:, 1:] - joints_e[:, parents[1:]])
    rot_h = jnp.concatenate([rot_mats, rel_joints], axis=-1)   # (B,J,3,4)
    pad_row = jnp.broadcast_to(
        jnp.array([0.0, 0.0, 0.0, 1.0], jnp.float32), (B, J, 1, 4))
    transforms_mat = jnp.concatenate([rot_h, pad_row], axis=-2)  # (B,J,4,4)

    # depth-batched composition (identical result to serial chain)
    world = [None] * J
    world[0] = transforms_mat[:, 0]
    for child_idx, parent_idx in levels:
        parent_T = jnp.stack([world[int(p)] for p in parent_idx], axis=1)
        res = jnp.matmul(parent_T, transforms_mat[:, child_idx])
        for i, c in enumerate(child_idx):
            world[int(c)] = res[:, i]
    transforms = jnp.stack(world, axis=1)                      # (B,J,4,4)

    posed_joints = transforms[:, :, :3, 3]
    joints_homogen = jnp.concatenate(
        [joints_e, jnp.zeros((B, J, 1, 1), jnp.float32)], axis=2)
    init_bone = transforms @ joints_homogen                    # (B,J,4,1)
    init_bone_pad = jnp.concatenate(
        [jnp.zeros((B, J, 4, 3), jnp.float32), init_bone], axis=-1)
    rel_transforms = transforms - init_bone_pad
    return posed_joints, rel_transforms


# ------------------------------ SMPL layer ----------------------------------

class SMPLLayerJAX:
    """Deterministic synthetic stand-in for SMPLLayer (no pickle loading)."""

    def __init__(self, key):
        k = jax.random.split(key, 5)
        self.v_template = 0.5 * jax.random.normal(k[0], (V, 3), jnp.float32)
        shapedirs = 0.01 * jax.random.normal(k[1], (V, 3, NUM_BETAS), jnp.float32)
        posedirs = 0.01 * jax.random.normal(k[2], (V, 3, POSE_BASIS), jnp.float32)
        jreg = jax.random.uniform(k[3], (NUM_J, V), jnp.float32)
        self.J_regressor = jreg / jnp.sum(jreg, axis=1, keepdims=True)
        w = jax.random.uniform(k[4], (V, NUM_J), jnp.float32)
        self.lbs_weights = jax.nn.softmax(4.0 * w, axis=1)
        self.lbs_weights_T = jnp.transpose(self.lbs_weights)        # (24,V) f32
        self.parents = SMPL_PARENTS
        self.levels = _compute_levels(SMPL_PARENTS)

        # coordinate-major flat template, f32 (kept out of the bf16 basis)
        self.v_template_cv = jnp.transpose(self.v_template, (1, 0)).reshape(1, V3)

        # fused bf16 blendshape basis: [shapedirs ; posedirs ; zero pad] (KB, 3V)
        shapedirs_cv = jnp.transpose(shapedirs, (2, 1, 0)).reshape(NUM_BETAS, V3)
        posedirs_cv = jnp.transpose(posedirs, (2, 1, 0)).reshape(POSE_BASIS, V3)
        pad_rows = KB - NUM_BETAS - POSE_BASIS
        self.basis_cv = jnp.concatenate(
            [shapedirs_cv, posedirs_cv, jnp.zeros((pad_rows, V3), jnp.float32)],
            axis=0).astype(jnp.bfloat16)                            # (224, 3V)

        # precomputed rest-pose joint regression fold (f32, tiny):
        #   joints_t = J_template + betas @ J_dirs
        J_template = self.J_regressor @ self.v_template             # (24, 3)
        self.J_template_flat = J_template.reshape(1, NUM_J * 3)
        self.J_dirs = jnp.einsum('jv,vcl->ljc', self.J_regressor,
                                 shapedirs).reshape(NUM_BETAS, NUM_J * 3)

    def forward(self, body_pose, betas, global_orient=None, transl=None,
                return_swing_twist_rotmat=False, return_twist_angle=False):
        if global_orient is not None:
            full_pose = jnp.concatenate([global_orient, body_pose], axis=1)
        else:
            full_pose = body_pose
        B = full_pose.shape[0]

        # axis-angle -> rotation matrices (pose2rot=True path)
        rot_mats = batch_rodrigues(full_pose.reshape(-1, 3)).reshape(
            B, NUM_J, 3, 3)
        ident = jnp.eye(3, dtype=jnp.float32)
        pose_feature = (rot_mats[:, 1:] - ident).reshape(B, POSE_BASIS)

        # rest-pose joints via precomputed regressor fold (plain JAX, f32, tiny)
        joints_t = (self.J_template_flat + betas @ self.J_dirs).reshape(
            B, NUM_J, 3)

        # kinematic chain (24 joints, tiny), depth-batched plain JAX
        joints, A = batch_rigid_transform(rot_mats, joints_t, self.parents,
                                          self.levels)
        # relative-transform rows, (c,k)-major / batch-minor: (12B, 24), f32
        a_rows = jnp.transpose(A[:, :, :3, :], (2, 3, 0, 1)).reshape(
            12 * B, NUM_J)

        # blendshape features: [betas | pose_feature | 0-pad] -> (B, 224) bf16
        feat = jnp.concatenate(
            [betas, pose_feature,
             jnp.zeros((B, KB - NUM_BETAS - POSE_BASIS), jnp.float32)],
            axis=1).astype(jnp.bfloat16)

        # single fused Pallas call: blendshapes + skinning, v_posed stays in VMEM
        verts_cv = lbs_fused(feat, self.basis_cv, self.v_template_cv, a_rows,
                             self.lbs_weights_T)
        vertices = jnp.transpose(verts_cv.reshape(B, 3, V), (0, 2, 1))  # (B,V,3)

        # TODO(synk): swing/twist rotmat decomposition, twist_angle and transl
        # application are not implemented (returned as None / ignored),
        # matching the previous stand-in.
        return ModelOutput(vertices=vertices, joints_t=joints_t, joints=joints,
                           rot_mats=rot_mats, swing_rotmat=None,
                           twist_rotmat=None, twist_angle=None)

    __call__ = forward


# ---------------------------------- main -------------------------------------

if __name__ == "__main__":
    key = jax.random.PRNGKey(0)
    k_model, k_pose, k_orient, k_betas = jax.random.split(key, 4)

    layer = SMPLLayerJAX(k_model)

    B = 2
    body_pose = 0.2 * jax.random.normal(k_pose, (B, (NUM_J - 1) * 3), jnp.float32)
    global_orient = 0.2 * jax.random.normal(k_orient, (B, 3), jnp.float32)
    betas = 0.5 * jax.random.normal(k_betas, (B, NUM_BETAS), jnp.float32)

    fwd = jax.jit(lambda bp, be, go: layer.forward(bp, be, global_orient=go))
    out = fwd(body_pose, betas, global_orient)
    jax.block_until_ready(out.vertices)
    jax.block_until_ready(out.joints)
    jax.block_until_ready(out.joints_t)
    jax.block_until_ready(out.rot_mats)

    assert out.vertices.shape == (B, V, 3)
    assert out.joints_t.shape == (B, NUM_J, 3)
    assert out.joints.shape == (B, NUM_J, 3)
    assert out.rot_mats.shape == (B, NUM_J, 3, 3)
    assert bool(jnp.isfinite(out.vertices).all())
    assert bool(jnp.isfinite(out.joints).all())

    print("KERNEL_OK")
</pallas_src>

<mosaic_0001>
module attributes {stable_mosaic.version = 11 : i64} {
  func.func @_lbs_fused_kernel(%arg0: i32, %arg1: memref<2x224xbf16, #tpu.memory_space<vmem>>, %arg2: memref<224x1536xbf16, #tpu.memory_space<vmem>>, %arg3: memref<1x1536xf32, #tpu.memory_space<vmem>>, %arg4: memref<24x24xf32, #tpu.memory_space<vmem>>, %arg5: memref<24x512xf32, #tpu.memory_space<vmem>>, %arg6: memref<2x1536xf32, #tpu.memory_space<vmem>>) attributes {dimension_semantics = [#tpu.dimension_semantics<arbitrary>], iteration_bounds = array<i64: 1>, scalar_prefetch = 0 : i64, scratch_operands = 0 : i64, tpu.core_type = #tpu.core_type<tc>, window_params = [{pipeline_mode = #tpu.pipeline_mode<synchronous>, transform_indices = @transform_0, window_bounds = array<i64: 2, 224>}, {pipeline_mode = #tpu.pipeline_mode<synchronous>, transform_indices = @transform_1, window_bounds = array<i64: 224, 1536>}, {pipeline_mode = #tpu.pipeline_mode<synchronous>, transform_indices = @transform_2, window_bounds = array<i64: 1, 1536>}, {pipeline_mode = #tpu.pipeline_mode<synchronous>, transform_indices = @transform_3, window_bounds = array<i64: 24, 24>}, {pipeline_mode = #tpu.pipeline_mode<synchronous>, transform_indices = @transform_4, window_bounds = array<i64: 24, 512>}, {pipeline_mode = #tpu.pipeline_mode<synchronous>, transform_indices = @transform_5, window_bounds = array<i64: 2, 1536>}]} {
    %c0 = arith.constant 0 : index
    %c0_0 = arith.constant 0 : index
    %0 = vector.load %arg1[%c0, %c0_0] : memref<2x224xbf16, #tpu.memory_space<vmem>>, vector<2x224xbf16>
    %c0_1 = arith.constant 0 : index
    %c0_2 = arith.constant 0 : index
    %1 = vector.load %arg2[%c0_1, %c0_2] : memref<224x1536xbf16, #tpu.memory_space<vmem>>, vector<224x1536xbf16>
    %cst = arith.constant dense<0.000000e+00> : vector<2x1536xf32>
    %2 = tpu.matmul %0, %1, %cst {dimension_numbers = #tpu.dot_dimension_numbers<[1], [0], [0], [1], [0, 0, 1, 1], [], []>} : vector<2x224xbf16>, vector<224x1536xbf16>, vector<2x1536xf32> -> vector<2x1536xf32>
    %c0_3 = arith.constant 0 : index
    %c0_4 = arith.constant 0 : index
    %3 = vector.load %arg3[%c0_3, %c0_4] : memref<1x1536xf32, #tpu.memory_space<vmem>>, vector<1x1536xf32>
    %4 = vector.broadcast %3 : vector<1x1536xf32> to vector<2x1536xf32>
    %5 = arith.addf %4, %2 : vector<2x1536xf32>
    %c0_5 = arith.constant 0 : index
    %c0_6 = arith.constant 0 : index
    %6 = vector.load %arg4[%c0_5, %c0_6] : memref<24x24xf32, #tpu.memory_space<vmem>>, vector<24x24xf32>
    %c0_7 = arith.constant 0 : index
    %c0_8 = arith.constant 0 : index
    %7 = vector.load %arg5[%c0_7, %c0_8] : memref<24x512xf32, #tpu.memory_space<vmem>>, vector<24x512xf32>
    %cst_9 = arith.constant dense<0.000000e+00> : vector<24x512xf32>
    %8 = tpu.matmul %6, %7, %cst_9 {dimension_numbers = #tpu.dot_dimension_numbers<[1], [0], [0], [1], [0, 0, 1, 1], [], []>} : vector<24x24xf32>, vector<24x512xf32>, vector<24x512xf32> -> vector<24x512xf32>
    %9 = vector.extract_strided_slice %5 {offsets = [0, 0], sizes = [2, 512], strides = [1, 1]} : vector<2x1536xf32> to vector<2x512xf32>
    %10 = vector.extract_strided_slice %5 {offsets = [0, 512], sizes = [2, 512], strides = [1, 1]} : vector<2x1536xf32> to vector<2x512xf32>
    %11 = vector.extract_strided_slice %5 {offsets = [0, 1024], sizes = [2, 512], strides = [1, 1]} : vector<2x1536xf32> to vector<2x512xf32>
    %12 = vector.extract_strided_slice %8 {offsets = [0, 0], sizes = [2, 512], strides = [1, 1]} : vector<24x512xf32> to vector<2x512xf32>
    %13 = vector.extract_strided_slice %8 {offsets = [2, 0], sizes = [2, 512], strides = [1, 1]} : vector<24x512xf32> to vector<2x512xf32>
    %14 = vector.extract_strided_slice %8 {offsets = [4, 0], sizes = [2, 512], strides = [1, 1]} : vector<24x512xf32> to vector<2x512xf32>
    %15 = vector.extract_strided_slice %8 {offsets = [6, 0], sizes = [2, 512], strides = [1, 1]} : vector<24x512xf32> to vector<2x512xf32>
    %16 = arith.mulf %12, %9 : vector<2x512xf32>
    %17 = arith.mulf %13, %10 : vector<2x512xf32>
    %18 = arith.addf %16, %17 : vector<2x512xf32>
    %19 = arith.mulf %14, %11 : vector<2x512xf32>
    %20 = arith.addf %18, %19 : vector<2x512xf32>
    %21 = arith.addf %20, %15 : vector<2x512xf32>
    %c0_10 = arith.constant 0 : index
    %c0_11 = arith.constant 0 : index
    %22 = vector.load %arg6[%c0_10, %c0_11] : memref<2x1536xf32, #tpu.memory_space<vmem>>, vector<2x512xf32>
    tpu.vector_store %arg6[%c0_10, %c0_11], %21 {strides = array<i32>} : memref<2x1536xf32, #tpu.memory_space<vmem>>, vector<2x512xf32>,
    %23 = vector.extract_strided_slice %8 {offsets = [8, 0], sizes = [2, 512], strides = [1, 1]} : vector<24x512xf32> to vector<2x512xf32>
    %24 = vector.extract_strided_slice %8 {offsets = [10, 0], sizes = [2, 512], strides = [1, 1]} : vector<24x512xf32> to vector<2x512xf32>
    %25 = vector.extract_strided_slice %8 {offsets = [12, 0], sizes = [2, 512], strides = [1, 1]} : vector<24x512xf32> to vector<2x512xf32>
    %26 = vector.extract_strided_slice %8 {offsets = [14, 0], sizes = [2, 512], strides = [1, 1]} : vector<24x512xf32> to vector<2x512xf32>
    %27 = arith.mulf %23, %9 : vector<2x512xf32>
    %28 = arith.mulf %24, %10 : vector<2x512xf32>
    %29 = arith.addf %27, %28 : vector<2x512xf32>
    %30 = arith.mulf %25, %11 : vector<2x512xf32>
    %31 = arith.addf %29, %30 : vector<2x512xf32>
    %32 = arith.addf %31, %26 : vector<2x512xf32>
    %c0_12 = arith.constant 0 : index
    %c512 = arith.constant 512 : index
    %33 = vector.load %arg6[%c0_12, %c512] : memref<2x1536xf32, #tpu.memory_space<vmem>>, vector<2x512xf32>
    tpu.vector_store %arg6[%c0_12, %c512], %32 {strides = array<i32>} : memref<2x1536xf32, #tpu.memory_space<vmem>>, vector<2x512xf32>,
    %34 = vector.extract_strided_slice %8 {offsets = [16, 0], sizes = [2, 512], strides = [1, 1]} : vector<24x512xf32> to vector<2x512xf32>
    %35 = vector.extract_strided_slice %8 {offsets = [18, 0], sizes = [2, 512], strides = [1, 1]} : vector<24x512xf32> to vector<2x512xf32>
    %36 = vector.extract_strided_slice %8 {offsets = [20, 0], sizes = [2, 512], strides = [1, 1]} : vector<24x512xf32> to vector<2x512xf32>
    %37 = vector.extract_strided_slice %8 {offsets = [22, 0], sizes = [2, 512], strides = [1, 1]} : vector<24x512xf32> to vector<2x512xf32>
    %38 = arith.mulf %34, %9 : vector<2x512xf32>
    %39 = arith.mulf %35, %10 : vector<2x512xf32>
    %40 = arith.addf %38, %39 : vector<2x512xf32>
    %41 = arith.mulf %36, %11 : vector<2x512xf32>
    %42 = arith.addf %40, %41 : vector<2x512xf32>
    %43 = arith.addf %42, %37 : vector<2x512xf32>
    %c0_13 = arith.constant 0 : index
    %c1024 = arith.constant 1024 : index
    %44 = vector.load %arg6[%c0_13, %c1024] : memref<2x1536xf32, #tpu.memory_space<vmem>>, vector<2x512xf32>
    tpu.vector_store %arg6[%c0_13, %c1024], %43 {strides = array<i32>} : memref<2x1536xf32, #tpu.memory_space<vmem>>, vector<2x512xf32>,
    return
  }
  func.func @transform_0(%arg0: i32) -> (i32, i32) {
    %c0_i32 = arith.constant 0 : i32
    %c0_i32_0 = arith.constant 0 : i32
    %c0_i32_1 = arith.constant 0 : i32
    return %c0_i32, %c0_i32_0 : i32, i32
  }
  func.func @transform_1(%arg0: i32) -> (i32, i32) {
    %c0_i32 = arith.constant 0 : i32
    %c0_i32_0 = arith.constant 0 : i32
    %c0_i32_1 = arith.constant 0 : i32
    return %c0_i32, %c0_i32_0 : i32, i32
  }
  func.func @transform_2(%arg0: i32) -> (i32, i32) {
    %c0_i32 = arith.constant 0 : i32
    %c0_i32_0 = arith.constant 0 : i32
    %c0_i32_1 = arith.constant 0 : i32
    return %c0_i32, %c0_i32_0 : i32, i32
  }
  func.func @transform_3(%arg0: i32) -> (i32, i32) {
    %c0_i32 = arith.constant 0 : i32
    %c0_i32_0 = arith.constant 0 : i32
    %c0_i32_1 = arith.constant 0 : i32
    return %c0_i32, %c0_i32_0 : i32, i32
  }
  func.func @transform_4(%arg0: i32) -> (i32, i32) {
    %c0_i32 = arith.constant 0 : i32
    %c0_i32_0 = arith.constant 0 : i32
    %c0_i32_1 = arith.constant 0 : i32
    return %c0_i32, %c0_i32_0 : i32, i32
  }
  func.func @transform_5(%arg0: i32) -> (i32, i32) {
    %c0_i32 = arith.constant 0 : i32
    %c0_i32_0 = arith.constant 0 : i32
    %c0_i32_1 = arith.constant 0 : i32
    return %c0_i32, %c0_i32_0 : i32, i32
  }
}

</mosaic_0001>

<llo_original>
// kernel: _lambda_.1
$region0: #{_lambda_.1}
  #allocation0 [shape = 'u32[]', space=smem, size = 0x4, offset = 0x4, fixed_abs, tag = 'smem constant byte address 0x4 - core index']
  #allocation1 [shape = 'u32[72,128]{1,0:T(1,128)}', space=vmem, size = 0x9000, scoped, tag = 'internal scratch']
  %s0 = inlined_call_operand.vmem [shape: bf16[2,224], index: 0, kind: input, shape index: {}]
  %s1 = inlined_call_operand.vmem [shape: bf16[224,1536], index: 1, kind: input, shape index: {}]
  %s2 = inlined_call_operand.vmem [shape: f32[1,1536], index: 2, kind: input, shape index: {}]
  %s3 = inlined_call_operand.vmem [shape: f32[24,24], index: 3, kind: input, shape index: {}]
  %s4 = inlined_call_operand.vmem [shape: f32[24,512], index: 4, kind: input, shape index: {}]
  %s5 = inlined_call_operand.vmem [shape: f32[2,1536], index: 5, kind: output, shape index: {}]
  %s6 = sld [smem:[#allocation0]]
  $region30: #{_lambda_.1} parent=0
    _
  %s8 = ssub.s32 1, %s6
  %s9 = scalar_select 0, %s8, %s6
  // Predicated region
  $region2: #{_lambda_.1} parent=0 // pred_check
    _
  $region3: #{_lambda_.1} parent=0 // pred_check_branch
    %11 = sbr.rel (0) target = $region5
  $region4: #{_lambda_.1} parent=0 // pred_region
    _
  $region5: #{_lambda_.1} parent=0 // pred_fallthru
    _
  // Predicated region
  $region6: #{_lambda_.1} parent=0 // pred_check
    _
  $region7: #{_lambda_.1} parent=0 // pred_check_branch
    %13 = sbr.rel (0) target = $region9
  $region8: #{_lambda_.1} parent=0 // pred_region
    _
  $region9: #{_lambda_.1} parent=0 // pred_fallthru
    _
  // Predicated region
  $region10: #{_lambda_.1} parent=0 // pred_check
    _
  $region11: #{_lambda_.1} parent=0 // pred_check_branch
    %15 = sbr.rel (0) target = $region13
  $region12: #{_lambda_.1} parent=0 // pred_region
    _
  $region13: #{_lambda_.1} parent=0 // pred_fallthru
    _
  // Predicated region
  $region14: #{_lambda_.1} parent=0 // pred_check
    _
  $region15: #{_lambda_.1} parent=0 // pred_check_branch
    %17 = sbr.rel (0) target = $region17
  $region16: #{_lambda_.1} parent=0 // pred_region
    _
  $region17: #{_lambda_.1} parent=0 // pred_fallthru
    _
  // Predicated region
  $region18: #{_lambda_.1} parent=0 // pred_check
    _
  $region19: #{_lambda_.1} parent=0 // pred_check_branch
    %19 = sbr.rel (0) target = $region21
  $region20: #{_lambda_.1} parent=0 // pred_region
    _
  $region21: #{_lambda_.1} parent=0 // pred_fallthru
    _
  %v21 = vld [vmem:[%s0] sm:$0x3]
  %v22 = vld [vmem:[%s1] sm:$0xff]
  %v23 = vld [vmem:[%s1 + $0x8] sm:$0xff]
  %v24 = vld [vmem:[%s1 + $0x10] sm:$0xff]
  %v25 = vld [vmem:[%s1 + $0x18] sm:$0xff]
  %v26 = vld [vmem:[%s1 + $0x20] sm:$0xff]
  %v27 = vld [vmem:[%s1 + $0x28] sm:$0xff]
  %v28 = vld [vmem:[%s1 + $0x30] sm:$0xff]
  %v29 = vld [vmem:[%s1 + $0x38] sm:$0xff]
  %v30 = vld [vmem:[%s1 + $0x40] sm:$0xff]
  %v31 = vld [vmem:[%s1 + $0x48] sm:$0xff]
  %v32 = vld [vmem:[%s1 + $0x50] sm:$0xff]
  %v33 = vld [vmem:[%s1 + $0x58] sm:$0xff]
  %v34 = vld [vmem:[%s1 + $0x60] sm:$0xff]
  %v35 = vld [vmem:[%s1 + $0x68] sm:$0xff]
  %v36 = vld [vmem:[%s1 + $0x70] sm:$0xff]
  %v37 = vld [vmem:[%s1 + $0x78] sm:$0xff]
  %v38 = vld [vmem:[%s1 + $0x80] sm:$0xff]
  %v39 = vld [vmem:[%s1 + $0x88] sm:$0xff]
  %v40 = vld [vmem:[%s1 + $0x90] sm:$0xff]
  %v41 = vld [vmem:[%s1 + $0x98] sm:$0xff]
  %v42 = vld [vmem:[%s1 + $0xa0] sm:$0xff]
  %v43 = vld [vmem:[%s1 + $0xa8] sm:$0xff]
  %v44 = vld [vmem:[%s1 + $0xb0] sm:$0xff]
  %v45 = vld [vmem:[%s1 + $0xb8] sm:$0xff]
  %v46 = vld [vmem:[%s1 + $0xc0] sm:$0xff]
  %v47 = vld [vmem:[%s1 + $0xc8] sm:$0xff]
  %v48 = vld [vmem:[%s1 + $0xd0] sm:$0xff]
  %v49 = vld [vmem:[%s1 + $0xd8] sm:$0xff]
  %v50 = vld [vmem:[%s1 + $0xe0] sm:$0xff]
  %v51 = vld [vmem:[%s1 + $0xe8] sm:$0xff]
  %v52 = vld [vmem:[%s1 + $0xf0] sm:$0xff]
  %v53 = vld [vmem:[%s1 + $0xf8] sm:$0xff]
  %v54 = vld [vmem:[%s1 + $0x100] sm:$0xff]
  %v55 = vld [vmem:[%s1 + $0x108] sm:$0xff]
  %v56 = vld [vmem:[%s1 + $0x110] sm:$0xff]
  %v57 = vld [vmem:[%s1 + $0x118] sm:$0xff]
  %v58 = vld [vmem:[%s1 + $0x120] sm:$0xff]
  %v59 = vld [vmem:[%s1 + $0x128] sm:$0xff]
  %v60 = vld [vmem:[%s1 + $0x130] sm:$0xff]
  %v61 = vld [vmem:[%s1 + $0x138] sm:$0xff]
  %v62 = vld [vmem:[%s1 + $0x140] sm:$0xff]
  %v63 = vld [vmem:[%s1 + $0x148] sm:$0xff]
  %v64 = vld [vmem:[%s1 + $0x150] sm:$0xff]
  %v65 = vld [vmem:[%s1 + $0x158] sm:$0xff]
  %v66 = vld [vmem:[%s1 + $0x160] sm:$0xff]
  %v67 = vld [vmem:[%s1 + $0x168] sm:$0xff]
  %v68 = vld [vmem:[%s1 + $0x170] sm:$0xff]
  %v69 = vld [vmem:[%s1 + $0x178] sm:$0xff]
  %v70 = vld [vmem:[%s1 + $0x180] sm:$0xff]
  %v71 = vld [vmem:[%s1 + $0x188] sm:$0xff]
  %v72 = vld [vmem:[%s1 + $0x190] sm:$0xff]
  %v73 = vld [vmem:[%s1 + $0x198] sm:$0xff]
  %v74 = vld [vmem:[%s1 + $0x1a0] sm:$0xff]
  %v75 = vld [vmem:[%s1 + $0x1a8] sm:$0xff]
  %v76 = vld [vmem:[%s1 + $0x1b0] sm:$0xff]
  %v77 = vld [vmem:[%s1 + $0x1b8] sm:$0xff]
  %v78 = vld [vmem:[%s1 + $0x1c0] sm:$0xff]
  %v79 = vld [vmem:[%s1 + $0x1c8] sm:$0xff]
  %v80 = vld [vmem:[%s1 + $0x1d0] sm:$0xff]
  %v81 = vld [vmem:[%s1 + $0x1d8] sm:$0xff]
  %v82 = vld [vmem:[%s1 + $0x1e0] sm:$0xff]
  %v83 = vld [vmem:[%s1 + $0x1e8] sm:$0xff]
  %v84 = vld [vmem:[%s1 + $0x1f0] sm:$0xff]
  %v85 = vld [vmem:[%s1 + $0x1f8] sm:$0xff]
  %v86 = vld [vmem:[%s1 + $0x200] sm:$0xff]
  %v87 = vld [vmem:[%s1 + $0x208] sm:$0xff]
  %v88 = vld [vmem:[%s1 + $0x210] sm:$0xff]
  %v89 = vld [vmem:[%s1 + $0x218] sm:$0xff]
  %v90 = vld [vmem:[%s1 + $0x220] sm:$0xff]
  %v91 = vld [vmem:[%s1 + $0x228] sm:$0xff]
  %v92 = vld [vmem:[%s1 + $0x230] sm:$0xff]
  %v93 = vld [vmem:[%s1 + $0x238] sm:$0xff]
  %v94 = vld [vmem:[%s1 + $0x240] sm:$0xff]
  %v95 = vld [vmem:[%s1 + $0x248] sm:$0xff]
  %v96 = vld [vmem:[%s1 + $0x250] sm:$0xff]
  %v97 = vld [vmem:[%s1 + $0x258] sm:$0xff]
  %v98 = vld [vmem:[%s1 + $0x260] sm:$0xff]
  %v99 = vld [vmem:[%s1 + $0x268] sm:$0xff]
  %v100 = vld [vmem:[%s1 + $0x270] sm:$0xff]
  %v101 = vld [vmem:[%s1 + $0x278] sm:$0xff]
  %v102 = vld [vmem:[%s1 + $0x280] sm:$0xff]
  %v103 = vld [vmem:[%s1 + $0x288] sm:$0xff]
  %v104 = vld [vmem:[%s1 + $0x290] sm:$0xff]
  %v105 = vld [vmem:[%s1 + $0x298] sm:$0xff]
  %v106 = vld [vmem:[%s1 + $0x2a0] sm:$0xff]
  %v107 = vld [vmem:[%s1 + $0x2a8] sm:$0xff]
  %v108 = vld [vmem:[%s1 + $0x2b0] sm:$0xff]
  %v109 = vld [vmem:[%s1 + $0x2b8] sm:$0xff]
  %v110 = vld [vmem:[%s1 + $0x2c0] sm:$0xff]
  %v111 = vld [vmem:[%s1 + $0x2c8] sm:$0xff]
  %v112 = vld [vmem:[%s1 + $0x2d0] sm:$0xff]
  %v113 = vld [vmem:[%s1 + $0x2d8] sm:$0xff]
  %v114 = vld [vmem:[%s1 + $0x2e0] sm:$0xff]
  %v115 = vld [vmem:[%s1 + $0x2e8] sm:$0xff]
  %v116 = vld [vmem:[%s1 + $0x2f0] sm:$0xff]
  %v117 = vld [vmem:[%s1 + $0x2f8] sm:$0xff]
  %v118 = vld [vmem:[%s1 + $0x300] sm:$0xff]
  %v119 = vld [vmem:[%s1 + $0x308] sm:$0xff]
  %v120 = vld [vmem:[%s1 + $0x310] sm:$0xff]
  %v121 = vld [vmem:[%s1 + $0x318] sm:$0xff]
  %v122 = vld [vmem:[%s1 + $0x320] sm:$0xff]
  %v123 = vld [vmem:[%s1 + $0x328] sm:$0xff]
  %v124 = vld [vmem:[%s1 + $0x330] sm:$0xff]
  %v125 = vld [vmem:[%s1 + $0x338] sm:$0xff]
  %v126 = vld [vmem:[%s1 + $0x340] sm:$0xff]
  %v127 = vld [vmem:[%s1 + $0x348] sm:$0xff]
  %v128 = vld [vmem:[%s1 + $0x350] sm:$0xff]
  %v129 = vld [vmem:[%s1 + $0x358] sm:$0xff]
  %v130 = vld [vmem:[%s1 + $0x360] sm:$0xff]
  %v131 = vld [vmem:[%s1 + $0x368] sm:$0xff]
  %v132 = vld [vmem:[%s1 + $0x370] sm:$0xff]
  %v133 = vld [vmem:[%s1 + $0x378] sm:$0xff]
  %v134 = vld [vmem:[%s1 + $0x380] sm:$0xff]
  %v135 = vld [vmem:[%s1 + $0x388] sm:$0xff]
  %v136 = vld [vmem:[%s1 + $0x390] sm:$0xff]
  %v137 = vld [vmem:[%s1 + $0x398] sm:$0xff]
  %v138 = vld [vmem:[%s1 + $0x3a0] sm:$0xff]
  %v139 = vld [vmem:[%s1 + $0x3a8] sm:$0xff]
  %v140 = vld [vmem:[%s1 + $0x3b0] sm:$0xff]
  %v141 = vld [vmem:[%s1 + $0x3b8] sm:$0xff]
  %v142 = vld [vmem:[%s1 + $0x3c0] sm:$0xff]
  %v143 = vld [vmem:[%s1 + $0x3c8] sm:$0xff]
  %v144 = vld [vmem:[%s1 + $0x3d0] sm:$0xff]
  %v145 = vld [vmem:[%s1 + $0x3d8] sm:$0xff]
  %v146 = vld [vmem:[%s1 + $0x3e0] sm:$0xff]
  %v147 = vld [vmem:[%s1 + $0x3e8] sm:$0xff]
  %v148 = vld [vmem:[%s1 + $0x3f0] sm:$0xff]
  %v149 = vld [vmem:[%s1 + $0x3f8] sm:$0xff]
  %v150 = vld [vmem:[%s1 + $0x400] sm:$0xff]
  %v151 = vld [vmem:[%s1 + $0x408] sm:$0xff]
  %v152 = vld [vmem:[%s1 + $0x410] sm:$0xff]
  %v153 = vld [vmem:[%s1 + $0x418] sm:$0xff]
  %v154 = vld [vmem:[%s1 + $0x420] sm:$0xff]
  %v155 = vld [vmem:[%s1 + $0x428] sm:$0xff]
  %v156 = vld [vmem:[%s1 + $0x430] sm:$0xff]
  %v157 = vld [vmem:[%s1 + $0x438] sm:$0xff]
  %v158 = vld [vmem:[%s1 + $0x440] sm:$0xff]
  %v159 = vld [vmem:[%s1 + $0x448] sm:$0xff]
  %v160 = vld [vmem:[%s1 + $0x450] sm:$0xff]
  %v161 = vld [vmem:[%s1 + $0x458] sm:$0xff]
  %v162 = vld [vmem:[%s1 + $0x460] sm:$0xff]
  %v163 = vld [vmem:[%s1 + $0x468] sm:$0xff]
  %v164 = vld [vmem:[%s1 + $0x470] sm:$0xff]
  %v165 = vld [vmem:[%s1 + $0x478] sm:$0xff]
  %v166 = vld [vmem:[%s1 + $0x480] sm:$0xff]
  %v167 = vld [vmem:[%s1 + $0x488] sm:$0xff]
  %v168 = vld [vmem:[%s1 + $0x490] sm:$0xff]
  %v169 = vld [vmem:[%s1 + $0x498] sm:$0xff]
  %v170 = vld [vmem:[%s1 + $0x4a0] sm:$0xff]
  %v171 = vld [vmem:[%s1 + $0x4a8] sm:$0xff]
  %v172 = vld [vmem:[%s1 + $0x4b0] sm:$0xff]
  %v173 = vld [vmem:[%s1 + $0x4b8] sm:$0xff]
  %v174 = vld [vmem:[%s1 + $0x4c0] sm:$0xff]
  %v175 = vld [vmem:[%s1 + $0x4c8] sm:$0xff]
  %v176 = vld [vmem:[%s1 + $0x4d0] sm:$0xff]
  %v177 = vld [vmem:[%s1 + $0x4d8] sm:$0xff]
  %v178 = vld [vmem:[%s1 + $0x4e0] sm:$0xff]
  %v179 = vld [vmem:[%s1 + $0x4e8] sm:$0xff]
  %v180 = vld [vmem:[%s1 + $0x4f0] sm:$0xff]
  %v181 = vld [vmem:[%s1 + $0x4f8] sm:$0xff]
  %v182 = vld [vmem:[%s1 + $0x500] sm:$0xff]
  %v183 = vld [vmem:[%s1 + $0x508] sm:$0xff]
  %v184 = vld [vmem:[%s1 + $0x510] sm:$0xff]
  %v185 = vld [vmem:[%s1 + $0x518] sm:$0xff]
  %v186 = vld [vmem:[%s1 + $0x520] sm:$0xff]
  %v187 = vld [vmem:[%s1 + $0x528] sm:$0xff]
  %v188 = vld [vmem:[%s1 + $0x530] sm:$0xff]
  %v189 = vld [vmem:[%s1 + $0x538] sm:$0xff]
  %191 = vst [vmem:[#allocation1] ss:$9 sm:$0xff] %v21
  %v192 = vld [vmem:[#allocation1] sm:$0xff]
  %v193 = vld [vmem:[#allocation1 + $0x9] sm:$0xff]
  %v363 = vunpack.c.l.b16 %v22
  %v364 = vunpack.c.h.b16 %v22
  %v365 = vunpack.c.l.b16 %v23
  %v366 = vunpack.c.h.b16 %v23
  %v367 = vunpack.c.l.b16 %v24
  %v368 = vunpack.c.h.b16 %v24
  %v369 = vunpack.c.l.b16 %v25
  %v370 = vunpack.c.h.b16 %v25
  %v371 = vunpack.c.l.b16 %v26
  %v372 = vunpack.c.h.b16 %v26
  %v373 = vunpack.c.l.b16 %v27
  %v374 = vunpack.c.h.b16 %v27
  %v375 = vunpack.c.l.b16 %v28
  %v376 = vunpack.c.h.b16 %v28
  %v377 = vunpack.c.l.b16 %v29
  %v378 = vunpack.c.h.b16 %v29
  %v379 = vunpack.c.l.b16 %v30
  %v380 = vunpack.c.h.b16 %v30
  %v381 = vunpack.c.l.b16 %v31
  %v382 = vunpack.c.h.b16 %v31
  %v383 = vunpack.c.l.b16 %v32
  %v384 = vunpack.c.h.b16 %v32
  %v385 = vunpack.c.l.b16 %v33
  %v386 = vunpack.c.h.b16 %v33
  %v387 = vunpack.c.l.b16 %v34
  %v388 = vunpack.c.h.b16 %v34
  %v389 = vunpack.c.l.b16 %v35
  %v390 = vunpack.c.h.b16 %v35
  %v391 = vunpack.c.l.b16 %v36
  %v392 = vunpack.c.h.b16 %v36
  %v393 = vunpack.c.l.b16 %v37
  %v394 = vunpack.c.h.b16 %v37
  %v395 = vunpack.c.l.b16 %v38
  %v396 = vunpack.c.h.b16 %v38
  %v397 = vunpack.c.l.b16 %v39
  %v398 = vunpack.c.h.b16 %v39
  %v399 = vunpack.c.l.b16 %v40
  %v400 = vunpack.c.h.b16 %v40
  %v401 = vunpack.c.l.b16 %v41
  %v402 = vunpack.c.h.b16 %v41
  %v403 = vunpack.c.l.b16 %v42
  %v404 = vunpack.c.h.b16 %v42
  %v405 = vunpack.c.l.b16 %v43
  %v406 = vunpack.c.h.b16 %v43
  %v407 = vunpack.c.l.b16 %v44
  %v408 = vunpack.c.h.b16 %v44
  %v409 = vunpack.c.l.b16 %v45
  %v410 = vunpack.c.h.b16 %v45
  %v411 = vunpack.c.l.b16 %v46
  %v412 = vunpack.c.h.b16 %v46
  %v413 = vunpack.c.l.b16 %v47
  %v414 = vunpack.c.h.b16 %v47
  %v415 = vunpack.c.l.b16 %v48
  %v416 = vunpack.c.h.b16 %v48
  %v417 = vunpack.c.l.b16 %v49
  %v418 = vunpack.c.h.b16 %v49
  %v419 = vunpack.c.l.b16 %v50
  %v420 = vunpack.c.h.b16 %v50
  %v421 = vunpack.c.l.b16 %v51
  %v422 = vunpack.c.h.b16 %v51
  %v423 = vunpack.c.l.b16 %v52
  %v424 = vunpack.c.h.b16 %v52
  %v425 = vunpack.c.l.b16 %v53
  %v426 = vunpack.c.h.b16 %v53
  %v427 = vunpack.c.l.b16 %v54
  %v428 = vunpack.c.h.b16 %v54
  %v429 = vunpack.c.l.b16 %v55
  %v430 = vunpack.c.h.b16 %v55
  %v431 = vunpack.c.l.b16 %v56
  %v432 = vunpack.c.h.b16 %v56
  %v433 = vunpack.c.l.b16 %v57
  %v434 = vunpack.c.h.b16 %v57
  %v435 = vunpack.c.l.b16 %v58
  %v436 = vunpack.c.h.b16 %v58
  %v437 = vunpack.c.l.b16 %v59
  %v438 = vunpack.c.h.b16 %v59
  %v439 = vunpack.c.l.b16 %v60
  %v440 = vunpack.c.h.b16 %v60
  %v441 = vunpack.c.l.b16 %v61
  %v442 = vunpack.c.h.b16 %v61
  %v443 = vunpack.c.l.b16 %v62
  %v444 = vunpack.c.h.b16 %v62
  %v445 = vunpack.c.l.b16 %v63
  %v446 = vunpack.c.h.b16 %v63
  %v447 = vunpack.c.l.b16 %v64
  %v448 = vunpack.c.h.b16 %v64
  %v449 = vunpack.c.l.b16 %v65
  %v450 = vunpack.c.h.b16 %v65
  %v451 = vunpack.c.l.b16 %v66
  %v452 = vunpack.c.h.b16 %v66
  %v453 = vunpack.c.l.b16 %v67
  %v454 = vunpack.c.h.b16 %v67
  %v455 = vunpack.c.l.b16 %v68
  %v456 = vunpack.c.h.b16 %v68
  %v457 = vunpack.c.l.b16 %v69
  %v458 = vunpack.c.h.b16 %v69
  %v459 = vunpack.c.l.b16 %v70
  %v460 = vunpack.c.h.b16 %v70
  %v461 = vunpack.c.l.b16 %v71
  %v462 = vunpack.c.h.b16 %v71
  %v463 = vunpack.c.l.b16 %v72
  %v464 = vunpack.c.h.b16 %v72
  %v465 = vunpack.c.l.b16 %v73
  %v466 = vunpack.c.h.b16 %v73
  %v467 = vunpack.c.l.b16 %v74
  %v468 = vunpack.c.h.b16 %v74
  %v469 = vunpack.c.l.b16 %v75
  %v470 = vunpack.c.h.b16 %v75
  %v471 = vunpack.c.l.b16 %v76
  %v472 = vunpack.c.h.b16 %v76
  %v473 = vunpack.c.l.b16 %v77
  %v474 = vunpack.c.h.b16 %v77
  %v475 = vunpack.c.l.b16 %v78
  %v476 = vunpack.c.h.b16 %v78
  %v477 = vunpack.c.l.b16 %v79
  %v478 = vunpack.c.h.b16 %v79
  %v479 = vunpack.c.l.b16 %v80
  %v480 = vunpack.c.h.b16 %v80
  %v481 = vunpack.c.l.b16 %v81
  %v482 = vunpack.c.h.b16 %v81
  %v483 = vunpack.c.l.b16 %v82
  %v484 = vunpack.c.h.b16 %v82
  %v485 = vunpack.c.l.b16 %v83
  %v486 = vunpack.c.h.b16 %v83
  %v487 = vunpack.c.l.b16 %v84
  %v488 = vunpack.c.h.b16 %v84
  %v489 = vunpack.c.l.b16 %v85
  %v490 = vunpack.c.h.b16 %v85
  %v491 = vunpack.c.l.b16 %v86
  %v492 = vunpack.c.h.b16 %v86
  %v493 = vunpack.c.l.b16 %v87
  %v494 = vunpack.c.h.b16 %v87
  %v495 = vunpack.c.l.b16 %v88
  %v496 = vunpack.c.h.b16 %v88
  %v497 = vunpack.c.l.b16 %v89
  %v498 = vunpack.c.h.b16 %v89
  %v499 = vunpack.c.l.b16 %v90
  %v500 = vunpack.c.h.b16 %v90
  %v501 = vunpack.c.l.b16 %v91
  %v502 = vunpack.c.h.b16 %v91
  %v503 = vunpack.c.l.b16 %v92
  %v504 = vunpack.c.h.b16 %v92
  %v505 = vunpack.c.l.b16 %v93
  %v506 = vunpack.c.h.b16 %v93
  %v507 = vunpack.c.l.b16 %v94
  %v508 = vunpack.c.h.b16 %v94
  %v509 = vunpack.c.l.b16 %v95
  %v510 = vunpack.c.h.b16 %v95
  %v511 = vunpack.c.l.b16 %v96
  %v512 = vunpack.c.h.b16 %v96
  %v513 = vunpack.c.l.b16 %v97
  %v514 = vunpack.c.h.b16 %v97
  %v515 = vunpack.c.l.b16 %v98
  %v516 = vunpack.c.h.b16 %v98
  %v517 = vunpack.c.l.b16 %v99
  %v518 = vunpack.c.h.b16 %v99
  %v519 = vunpack.c.l.b16 %v100
  %v520 = vunpack.c.h.b16 %v100
  %v521 = vunpack.c.l.b16 %v101
  %v522 = vunpack.c.h.b16 %v101
  %v523 = vunpack.c.l.b16 %v102
  %v524 = vunpack.c.h.b16 %v102
  %v525 = vunpack.c.l.b16 %v103
  %v526 = vunpack.c.h.b16 %v103
  %v527 = vunpack.c.l.b16 %v104
  %v528 = vunpack.c.h.b16 %v104
  %v529 = vunpack.c.l.b16 %v105
  %v530 = vunpack.c.h.b16 %v105
  %v531 = vunpack.c.l.b16 %v106
  %v532 = vunpack.c.h.b16 %v106
  %v533 = vunpack.c.l.b16 %v107
  %v534 = vunpack.c.h.b16 %v107
  %v535 = vunpack.c.l.b16 %v108
  %v536 = vunpack.c.h.b16 %v108
  %v537 = vunpack.c.l.b16 %v109
  %v538 = vunpack.c.h.b16 %v109
  %v539 = vunpack.c.l.b16 %v110
  %v540 = vunpack.c.h.b16 %v110
  %v541 = vunpack.c.l.b16 %v111
  %v542 = vunpack.c.h.b16 %v111
  %v543 = vunpack.c.l.b16 %v112
  %v544 = vunpack.c.h.b16 %v112
  %v545 = vunpack.c.l.b16 %v113
  %v546 = vunpack.c.h.b16 %v113
  %v547 = vunpack.c.l.b16 %v114
  %v548 = vunpack.c.h.b16 %v114
  %v549 = vunpack.c.l.b16 %v115
  %v550 = vunpack.c.h.b16 %v115
  %v551 = vunpack.c.l.b16 %v116
  %v552 = vunpack.c.h.b16 %v116
  %v553 = vunpack.c.l.b16 %v117
  %v554 = vunpack.c.h.b16 %v117
  %v555 = vunpack.c.l.b16 %v118
  %v556 = vunpack.c.h.b16 %v118
  %v557 = vunpack.c.l.b16 %v119
  %v558 = vunpack.c.h.b16 %v119
  %v559 = vunpack.c.l.b16 %v120
  %v560 = vunpack.c.h.b16 %v120
  %v561 = vunpack.c.l.b16 %v121
  %v562 = vunpack.c.h.b16 %v121
  %v563 = vunpack.c.l.b16 %v122
  %v564 = vunpack.c.h.b16 %v122
  %v565 = vunpack.c.l.b16 %v123
  %v566 = vunpack.c.h.b16 %v123
  %v567 = vunpack.c.l.b16 %v124
  %v568 = vunpack.c.h.b16 %v124
  %v569 = vunpack.c.l.b16 %v125
  %v570 = vunpack.c.h.b16 %v125
  %v571 = vunpack.c.l.b16 %v126
  %v572 = vunpack.c.h.b16 %v126
  %v573 = vunpack.c.l.b16 %v127
  %v574 = vunpack.c.h.b16 %v127
  %v575 = vunpack.c.l.b16 %v128
  %v576 = vunpack.c.h.b16 %v128
  %v577 = vunpack.c.l.b16 %v129
  %v578 = vunpack.c.h.b16 %v129
  %v579 = vunpack.c.l.b16 %v130
  %v580 = vunpack.c.h.b16 %v130
  %v581 = vunpack.c.l.b16 %v131
  %v582 = vunpack.c.h.b16 %v131
  %v583 = vunpack.c.l.b16 %v132
  %v584 = vunpack.c.h.b16 %v132
  %v585 = vunpack.c.l.b16 %v133
  %v586 = vunpack.c.h.b16 %v133
  %v587 = vunpack.c.l.b16 %v134
  %v588 = vunpack.c.h.b16 %v134
  %v589 = vunpack.c.l.b16 %v135
  %v590 = vunpack.c.h.b16 %v135
  %v591 = vunpack.c.l.b16 %v136
  %v592 = vunpack.c.h.b16 %v136
  %v593 = vunpack.c.l.b16 %v137
  %v594 = vunpack.c.h.b16 %v137
  %v595 = vunpack.c.l.b16 %v138
  %v596 = vunpack.c.h.b16 %v138
  %v597 = vunpack.c.l.b16 %v139
  %v598 = vunpack.c.h.b16 %v139
  %v599 = vunpack.c.l.b16 %v140
  %v600 = vunpack.c.h.b16 %v140
  %v601 = vunpack.c.l.b16 %v141
  %v602 = vunpack.c.h.b16 %v141
  %v603 = vunpack.c.l.b16 %v142
  %v604 = vunpack.c.h.b16 %v142
  %v605 = vunpack.c.l.b16 %v143
  %v606 = vunpack.c.h.b16 %v143
  %v607 = vunpack.c.l.b16 %v144
  %v608 = vunpack.c.h.b16 %v144
  %v609 = vunpack.c.l.b16 %v145
  %v610 = vunpack.c.h.b16 %v145
  %v611 = vunpack.c.l.b16 %v146
  %v612 = vunpack.c.h.b16 %v146
  %v613 = vunpack.c.l.b16 %v147
  %v614 = vunpack.c.h.b16 %v147
  %v615 = vunpack.c.l.b16 %v148
  %v616 = vunpack.c.h.b16 %v148
  %v617 = vunpack.c.l.b16 %v149
  %v618 = vunpack.c.h.b16 %v149
  %v619 = vunpack.c.l.b16 %v150
  %v620 = vunpack.c.h.b16 %v150
  %v621 = vunpack.c.l.b16 %v151
  %v622 = vunpack.c.h.b16 %v151
  %v623 = vunpack.c.l.b16 %v152
  %v624 = vunpack.c.h.b16 %v152
  %v625 = vunpack.c.l.b16 %v153
  %v626 = vunpack.c.h.b16 %v153
  %v627 = vunpack.c.l.b16 %v154
  %v628 = vunpack.c.h.b16 %v154
  %v629 = vunpack.c.l.b16 %v155
  %v630 = vunpack.c.h.b16 %v155
  %v631 = vunpack.c.l.b16 %v156
  %v632 = vunpack.c.h.b16 %v156
  %v633 = vunpack.c.l.b16 %v157
  %v634 = vunpack.c.h.b16 %v157
  %v635 = vunpack.c.l.b16 %v158
  %v636 = vunpack.c.h.b16 %v158
  %v637 = vunpack.c.l.b16 %v159
  %v638 = vunpack.c.h.b16 %v159
  %v639 = vunpack.c.l.b16 %v160
  %v640 = vunpack.c.h.b16 %v160
  %v641 = vunpack.c.l.b16 %v161
  %v642 = vunpack.c.h.b16 %v161
  %v643 = vunpack.c.l.b16 %v162
  %v644 = vunpack.c.h.b16 %v162
  %v645 = vunpack.c.l.b16 %v163
  %v646 = vunpack.c.h.b16 %v163
  %v647 = vunpack.c.l.b16 %v164
  %v648 = vunpack.c.h.b16 %v164
  %v649 = vunpack.c.l.b16 %v165
  %v650 = vunpack.c.h.b16 %v165
  %v651 = vunpack.c.l.b16 %v166
  %v652 = vunpack.c.h.b16 %v166
  %v653 = vunpack.c.l.b16 %v167
  %v654 = vunpack.c.h.b16 %v167
  %v655 = vunpack.c.l.b16 %v168
  %v656 = vunpack.c.h.b16 %v168
  %v657 = vunpack.c.l.b16 %v169
  %v658 = vunpack.c.h.b16 %v169
  %v659 = vunpack.c.l.b16 %v170
  %v660 = vunpack.c.h.b16 %v170
  %v661 = vunpack.c.l.b16 %v171
  %v662 = vunpack.c.h.b16 %v171
  %v663 = vunpack.c.l.b16 %v172
  %v664 = vunpack.c.h.b16 %v172
  %v665 = vunpack.c.l.b16 %v173
  %v666 = vunpack.c.h.b16 %v173
  %v667 = vunpack.c.l.b16 %v174
  %v668 = vunpack.c.h.b16 %v174
  %v669 = vunpack.c.l.b16 %v175
  %v670 = vunpack.c.h.b16 %v175
  %v671 = vunpack.c.l.b16 %v176
  %v672 = vunpack.c.h.b16 %v176
  %v673 = vunpack.c.l.b16 %v177
  %v674 = vunpack.c.h.b16 %v177
  %v675 = vunpack.c.l.b16 %v178
  %v676 = vunpack.c.h.b16 %v178
  %v677 = vunpack.c.l.b16 %v179
  %v678 = vunpack.c.h.b16 %v179
  %v679 = vunpack.c.l.b16 %v180
  %v680 = vunpack.c.h.b16 %v180
  %v681 = vunpack.c.l.b16 %v181
  %v682 = vunpack.c.h.b16 %v181
  %v683 = vunpack.c.l.b16 %v182
  %v684 = vunpack.c.h.b16 %v182
  %v685 = vunpack.c.l.b16 %v183
  %v686 = vunpack.c.h.b16 %v183
  %v687 = vunpack.c.l.b16 %v184
  %v688 = vunpack.c.h.b16 %v184
  %v689 = vunpack.c.l.b16 %v185
  %v690 = vunpack.c.h.b16 %v185
  %v691 = vunpack.c.l.b16 %v186
  %v692 = vunpack.c.h.b16 %v186
  %v693 = vunpack.c.l.b16 %v187
  %v694 = vunpack.c.h.b16 %v187
  %v695 = vunpack.c.l.b16 %v188
  %v696 = vunpack.c.h.b16 %v188
  %v697 = vunpack.c.l.b16 %v189
  %v698 = vunpack.c.h.b16 %v189
  %v699 = vpack.c.b16 %v375, %v363
  %v700 = vpack.c.b16 %v376, %v364
  %v701 = vpack.c.b16 %v377, %v365
  %v702 = vpack.c.b16 %v378, %v366
  %v703 = vpack.c.b16 %v379, %v367
  %v704 = vpack.c.b16 %v380, %v368
  %v705 = vpack.c.b16 %v381, %v369
  %v706 = vpack.c.b16 %v382, %v370
  %v707 = vpack.c.b16 %v383, %v371
  %v708 = vpack.c.b16 %v384, %v372
  %v709 = vpack.c.b16 %v385, %v373
  %v710 = vpack.c.b16 %v386, %v374
  %v711 = vpack.c.b16 %v399, %v387
  %v712 = vpack.c.b16 %v400, %v388
  %v713 = vpack.c.b16 %v401, %v389
  %v714 = vpack.c.b16 %v402, %v390
  %v715 = vpack.c.b16 %v403, %v391
  %v716 = vpack.c.b16 %v404, %v392
  %v717 = vpack.c.b16 %v405, %v393
  %v718 = vpack.c.b16 %v406, %v394
  %v719 = vpack.c.b16 %v407, %v395
  %v720 = vpack.c.b16 %v408, %v396
  %v721 = vpack.c.b16 %v409, %v397
  %v722 = vpack.c.b16 %v410, %v398
  %v723 = vpack.c.b16 %v423, %v411
  %v724 = vpack.c.b16 %v424, %v412
  %v725 = vpack.c.b16 %v425, %v413
  %v726 = vpack.c.b16 %v426, %v414
  %v727 = vpack.c.b16 %v427, %v415
  %v728 = vpack.c.b16 %v428, %v416
  %v729 = vpack.c.b16 %v429, %v417
  %v730 = vpack.c.b16 %v430, %v418
  %v731 = vpack.c.b16 %v431, %v419
  %v732 = vpack.c.b16 %v432, %v420
  %v733 = vpack.c.b16 %v433, %v421
  %v734 = vpack.c.b16 %v434, %v422
  %v735 = vpack.c.b16 %v447, %v435
  %v736 = vpack.c.b16 %v448, %v436
  %v737 = vpack.c.b16 %v449, %v437
  %v738 = vpack.c.b16 %v450, %v438
  %v739 = vpack.c.b16 %v451, %v439
  %v740 = vpack.c.b16 %v452, %v440
  %v741 = vpack.c.b16 %v453, %v441
  %v742 = vpack.c.b16 %v454, %v442
  %v743 = vpack.c.b16 %v455, %v443
  %v744 = vpack.c.b16 %v456, %v444
  %v745 = vpack.c.b16 %v457, %v445
  %v746 = vpack.c.b16 %v458, %v446
  %v747 = vpack.c.b16 %v471, %v459
  %v748 = vpack.c.b16 %v472, %v460
  %v749 = vpack.c.b16 %v473, %v461
  %v750 = vpack.c.b16 %v474, %v462
  %v751 = vpack.c.b16 %v475, %v463
  %v752 = vpack.c.b16 %v476, %v464
  %v753 = vpack.c.b16 %v477, %v465
  %v754 = vpack.c.b16 %v478, %v466
  %v755 = vpack.c.b16 %v479, %v467
  %v756 = vpack.c.b16 %v480, %v468
  %v757 = vpack.c.b16 %v481, %v469
  %v758 = vpack.c.b16 %v482, %v470
  %v759 = vpack.c.b16 %v495, %v483
  %v760 = vpack.c.b16 %v496, %v484
  %v761 = vpack.c.b16 %v497, %v485
  %v762 = vpack.c.b16 %v498, %v486
  %v763 = vpack.c.b16 %v499, %v487
  %v764 = vpack.c.b16 %v500, %v488
  %v765 = vpack.c.b16 %v501, %v489
  %v766 = vpack.c.b16 %v502, %v490
  %v767 = vpack.c.b16 %v503, %v491
  %v768 = vpack.c.b16 %v504, %v492
  %v769 = vpack.c.b16 %v505, %v493
  %v770 = vpack.c.b16 %v506, %v494
  %v771 = vpack.c.b16 %v519, %v507
  %v772 = vpack.c.b16 %v520, %v508
  %v773 = vpack.c.b16 %v521, %v509
  %v774 = vpack.c.b16 %v522, %v510
  %v775 = vpack.c.b16 %v523, %v511
  %v776 = vpack.c.b16 %v524, %v512
  %v777 = vpack.c.b16 %v525, %v513
  %v778 = vpack.c.b16 %v526, %v514
  %v779 = vpack.c.b16 %v527, %v515
  %v780 = vpack.c.b16 %v528, %v516
  %v781 = vpack.c.b16 %v529, %v517
  %v782 = vpack.c.b16 %v530, %v518
  %v783 = vpack.c.b16 %v543, %v531
  %v784 = vpack.c.b16 %v544, %v532
  %v785 = vpack.c.b16 %v545, %v533
  %v786 = vpack.c.b16 %v546, %v534
  %v787 = vpack.c.b16 %v547, %v535
  %v788 = vpack.c.b16 %v548, %v536
  %v789 = vpack.c.b16 %v549, %v537
  %v790 = vpack.c.b16 %v550, %v538
  %v791 = vpack.c.b16 %v551, %v539
  %v792 = vpack.c.b16 %v552, %v540
  %v793 = vpack.c.b16 %v553, %v541
  %v794 = vpack.c.b16 %v554, %v542
  %v795 = vpack.c.b16 %v567, %v555
  %v796 = vpack.c.b16 %v568, %v556
  %v797 = vpack.c.b16 %v569, %v557
  %v798 = vpack.c.b16 %v570, %v558
  %v799 = vpack.c.b16 %v571, %v559
  %v800 = vpack.c.b16 %v572, %v560
  %v801 = vpack.c.b16 %v573, %v561
  %v802 = vpack.c.b16 %v574, %v562
  %v803 = vpack.c.b16 %v575, %v563
  %v804 = vpack.c.b16 %v576, %v564
  %v805 = vpack.c.b16 %v577, %v565
  %v806 = vpack.c.b16 %v578, %v566
  %v807 = vpack.c.b16 %v591, %v579
  %v808 = vpack.c.b16 %v592, %v580
  %v809 = vpack.c.b16 %v593, %v581
  %v810 = vpack.c.b16 %v594, %v582
  %v811 = vpack.c.b16 %v595, %v583
  %v812 = vpack.c.b16 %v596, %v584
  %v813 = vpack.c.b16 %v597, %v585
  %v814 = vpack.c.b16 %v598, %v586
  %v815 = vpack.c.b16 %v599, %v587
  %v816 = vpack.c.b16 %v600, %v588
  %v817 = vpack.c.b16 %v601, %v589
  %v818 = vpack.c.b16 %v602, %v590
  %v819 = vpack.c.b16 %v615, %v603
  %v820 = vpack.c.b16 %v616, %v604
  %v821 = vpack.c.b16 %v617, %v605
  %v822 = vpack.c.b16 %v618, %v606
  %v823 = vpack.c.b16 %v619, %v607
  %v824 = vpack.c.b16 %v620, %v608
  %v825 = vpack.c.b16 %v621, %v609
  %v826 = vpack.c.b16 %v622, %v610
  %v827 = vpack.c.b16 %v623, %v611
  %v828 = vpack.c.b16 %v624, %v612
  %v829 = vpack.c.b16 %v625, %v613
  %v830 = vpack.c.b16 %v626, %v614
  %v831 = vpack.c.b16 %v639, %v627
  %v832 = vpack.c.b16 %v640, %v628
  %v833 = vpack.c.b16 %v641, %v629
  %v834 = vpack.c.b16 %v642, %v630
  %v835 = vpack.c.b16 %v643, %v631
  %v836 = vpack.c.b16 %v644, %v632
  %v837 = vpack.c.b16 %v645, %v633
  %v838 = vpack.c.b16 %v646, %v634
  %v839 = vpack.c.b16 %v647, %v635
  %v840 = vpack.c.b16 %v648, %v636
  %v841 = vpack.c.b16 %v649, %v637
  %v842 = vpack.c.b16 %v650, %v638
  %v843 = vpack.c.b16 %v663, %v651
  %v844 = vpack.c.b16 %v664, %v652
  %v845 = vpack.c.b16 %v665, %v653
  %v846 = vpack.c.b16 %v666, %v654
  %v847 = vpack.c.b16 %v667, %v655
  %v848 = vpack.c.b16 %v668, %v656
  %v849 = vpack.c.b16 %v669, %v657
  %v850 = vpack.c.b16 %v670, %v658
  %v851 = vpack.c.b16 %v671, %v659
  %v852 = vpack.c.b16 %v672, %v660
  %v853 = vpack.c.b16 %v673, %v661
  %v854 = vpack.c.b16 %v674, %v662
  %v855 = vpack.c.b16 %v687, %v675
  %v856 = vpack.c.b16 %v688, %v676
  %v857 = vpack.c.b16 %v689, %v677
  %v858 = vpack.c.b16 %v690, %v678
  %v859 = vpack.c.b16 %v691, %v679
  %v860 = vpack.c.b16 %v692, %v680
  %v861 = vpack.c.b16 %v693, %v681
  %v862 = vpack.c.b16 %v694, %v682
  %v863 = vpack.c.b16 %v695, %v683
  %v864 = vpack.c.b16 %v696, %v684
  %v865 = vpack.c.b16 %v697, %v685
  %v866 = vpack.c.b16 %v698, %v686
  %vm1035 = vcmask 785408
  %v1036 = vsel %vm1035, %v193, 0
  %1038 = vmatpush.bf16.msra.mxu0 %v783
  %1039 = vmatpush.bf16.msra.mxu0 %v771
  %1040 = vmatpush.bf16.msra.mxu0 %v759
  %1041 = vmatpush.bf16.msra.mxu0 %v747
  %1042 = vmatpush.bf16.msra.mxu0 %v735
  %1043 = vmatpush.bf16.msra.mxu0 %v723
  %1044 = vmatpush.bf16.msra.mxu0 %v711
  %1045 = vmatpush.bf16.msra.mxu0 %v699
  %1046 = vmatmul.bf16.gmra.mxu0 %v192
  %v1047 = vpop.f32.mrf.mxu0
  %v1048 = vadd.f32 0.0, %v1047
  %v1049 = vpop.f32.mrf.mxu0
  %1050 = vdwg.mxu0
  %1051 = vmatpush.bf16.msra.mxu0 0
  %1052 = vmatpush.bf16.msra.mxu0 0
  %1053 = vmatpush.bf16.msra.mxu0 %v855
  %1054 = vmatpush.bf16.msra.mxu0 %v843
  %1055 = vmatpush.bf16.msra.mxu0 %v831
  %1056 = vmatpush.bf16.msra.mxu0 %v819
  %1057 = vmatpush.bf16.msra.mxu0 %v807
  %1058 = vmatpush.bf16.msra.mxu0 %v795
  %1059 = vmatmul.bf16.gmra.mxu0 %v1036
  %v1060 = vpop.f32.mrf.mxu0
  %v1061 = vadd.f32 %v1048, %v1060
  %v1062 = vpop.f32.mrf.mxu0
  %1063 = vdwg.mxu0
  %1064 = vmatpush.bf16.msra.mxu0 %v784
  %1065 = vmatpush.bf16.msra.mxu0 %v772
  %1066 = vmatpush.bf16.msra.mxu0 %v760
  %1067 = vmatpush.bf16.msra.mxu0 %v748
  %1068 = vmatpush.bf16.msra.mxu0 %v736
  %1069 = vmatpush.bf16.msra.mxu0 %v724
  %1070 = vmatpush.bf16.msra.mxu0 %v712
  %1071 = vmatpush.bf16.msra.mxu0 %v700
  %1072 = vmatmul.bf16.gmra.mxu0 %v192
  %v1073 = vpop.f32.mrf.mxu0
  %v1074 = vadd.f32 0.0, %v1073
  %v1075 = vpop.f32.mrf.mxu0
  %1076 = vdwg.mxu0
  %1077 = vmatpush.bf16.msra.mxu0 0
  %1078 = vmatpush.bf16.msra.mxu0 0
  %1079 = vmatpush.bf16.msra.mxu0 %v856
  %1080 = vmatpush.bf16.msra.mxu0 %v844
  %1081 = vmatpush.bf16.msra.mxu0 %v832
  %1082 = vmatpush.bf16.msra.mxu0 %v820
  %1083 = vmatpush.bf16.msra.mxu0 %v808
  %1084 = vmatpush.bf16.msra.mxu0 %v796
  %1085 = vmatmul.bf16.gmra.mxu0 %v1036
  %v1086 = vpop.f32.mrf.mxu0
  %v1087 = vadd.f32 %v1074, %v1086
  %v1088 = vpop.f32.mrf.mxu0
  %1089 = vdwg.mxu0
  %1090 = vmatpush.bf16.msra.mxu0 %v785
  %1091 = vmatpush.bf16.msra.mxu0 %v773
  %1092 = vmatpush.bf16.msra.mxu0 %v761
  %1093 = vmatpush.bf16.msra.mxu0 %v749
  %1094 = vmatpush.bf16.msra.mxu0 %v737
  %1095 = vmatpush.bf16.msra.mxu0 %v725
  %1096 = vmatpush.bf16.msra.mxu0 %v713
  %1097 = vmatpush.bf16.msra.mxu0 %v701
  %1098 = vmatmul.bf16.gmra.mxu0 %v192
  %v1099 = vpop.f32.mrf.mxu0
  %v1100 = vadd.f32 0.0, %v1099
  %v1101 = vpop.f32.mrf.mxu0
  %1102 = vdwg.mxu0
  %1103 = vmatpush.bf16.msra.mxu0 0
  %1104 = vmatpush.bf16.msra.mxu0 0
  %1105 = vmatpush.bf16.msra.mxu0 %v857
  %1106 = vmatpush.bf16.msra.mxu0 %v845
  %1107 = vmatpush.bf16.msra.mxu0 %v833
  %1108 = vmatpush.bf16.msra.mxu0 %v821
  %1109 = vmatpush.bf16.msra.mxu0 %v809
  %1110 = vmatpush.bf16.msra.mxu0 %v797
  %1111 = vmatmul.bf16.gmra.mxu0 %v1036
  %v1112 = vpop.f32.mrf.mxu0
  %v1113 = vadd.f32 %v1100, %v1112
  %v1114 = vpop.f32.mrf.mxu0
  %1115 = vdwg.mxu0
  %1116 = vmatpush.bf16.msra.mxu0 %v786
  %1117 = vmatpush.bf16.msra.mxu0 %v774
  %1118 = vmatpush.bf16.msra.mxu0 %v762
  %1119 = vmatpush.bf16.msra.mxu0 %v750
  %1120 = vmatpush.bf16.msra.mxu0 %v738
  %1121 = vmatpush.bf16.msra.mxu0 %v726
  %1122 = vmatpush.bf16.msra.mxu0 %v714
  %1123 = vmatpush.bf16.msra.mxu0 %v702
  %1124 = vmatmul.bf16.gmra.mxu0 %v192
  %v1125 = vpop.f32.mrf.mxu0
  %v1126 = vadd.f32 0.0, %v1125
  %v1127 = vpop.f32.mrf.mxu0
  %1128 = vdwg.mxu0
  %1129 = vmatpush.bf16.msra.mxu0 0
  %1130 = vmatpush.bf16.msra.mxu0 0
  %1131 = vmatpush.bf16.msra.mxu0 %v858
  %1132 = vmatpush.bf16.msra.mxu0 %v846
  %1133 = vmatpush.bf16.msra.mxu0 %v834
  %1134 = vmatpush.bf16.msra.mxu0 %v822
  %1135 = vmatpush.bf16.msra.mxu0 %v810
  %1136 = vmatpush.bf16.msra.mxu0 %v798
  %1137 = vmatmul.bf16.gmra.mxu0 %v1036
  %v1138 = vpop.f32.mrf.mxu0
  %v1139 = vadd.f32 %v1126, %v1138
  %v1140 = vpop.f32.mrf.mxu0
  %1141 = vdwg.mxu0
  %1142 = vmatpush.bf16.msra.mxu0 %v787
  %1143 = vmatpush.bf16.msra.mxu0 %v775
  %1144 = vmatpush.bf16.msra.mxu0 %v763
  %1145 = vmatpush.bf16.msra.mxu0 %v751
  %1146 = vmatpush.bf16.msra.mxu0 %v739
  %1147 = vmatpush.bf16.msra.mxu0 %v727
  %1148 = vmatpush.bf16.msra.mxu0 %v715
  %1149 = vmatpush.bf16.msra.mxu0 %v703
  %1150 = vmatmul.bf16.gmra.mxu0 %v192
  %v1151 = vpop.f32.mrf.mxu0
  %v1152 = vadd.f32 0.0, %v1151
  %v1153 = vpop.f32.mrf.mxu0
  %1154 = vdwg.mxu0
  %1155 = vmatpush.bf16.msra.mxu0 0
  %1156 = vmatpush.bf16.msra.mxu0 0
  %1157 = vmatpush.bf16.msra.mxu0 %v859
  %1158 = vmatpush.bf16.msra.mxu0 %v847
  %1159 = vmatpush.bf16.msra.mxu0 %v835
  %1160 = vmatpush.bf16.msra.mxu0 %v823
  %1161 = vmatpush.bf16.msra.mxu0 %v811
  %1162 = vmatpush.bf16.msra.mxu0 %v799
  %1163 = vmatmul.bf16.gmra.mxu0 %v1036
  %v1164 = vpop.f32.mrf.mxu0
  %v1165 = vadd.f32 %v1152, %v1164
  %v1166 = vpop.f32.mrf.mxu0
  %1167 = vdwg.mxu0
  %1168 = vmatpush.bf16.msra.mxu0 %v788
  %1169 = vmatpush.bf16.msra.mxu0 %v776
  %1170 = vmatpush.bf16.msra.mxu0 %v764
  %1171 = vmatpush.bf16.msra.mxu0 %v752
  %1172 = vmatpush.bf16.msra.mxu0 %v740
  %1173 = vmatpush.bf16.msra.mxu0 %v728
  %1174 = vmatpush.bf16.msra.mxu0 %v716
  %1175 = vmatpush.bf16.msra.mxu0 %v704
  %1176 = vmatmul.bf16.gmra.mxu0 %v192
  %v1177 = vpop.f32.mrf.mxu0
  %v1178 = vadd.f32 0.0, %v1177
  %v1179 = vpop.f32.mrf.mxu0
  %1180 = vdwg.mxu0
  %1181 = vmatpush.bf16.msra.mxu0 0
  %1182 = vmatpush.bf16.msra.mxu0 0
  %1183 = vmatpush.bf16.msra.mxu0 %v860
  %1184 = vmatpush.bf16.msra.mxu0 %v848
  %1185 = vmatpush.bf16.msra.mxu0 %v836
  %1186 = vmatpush.bf16.msra.mxu0 %v824
  %1187 = vmatpush.bf16.msra.mxu0 %v812
  %1188 = vmatpush.bf16.msra.mxu0 %v800
  %1189 = vmatmul.bf16.gmra.mxu0 %v1036
  %v1190 = vpop.f32.mrf.mxu0
  %v1191 = vadd.f32 %v1178, %v1190
  %v1192 = vpop.f32.mrf.mxu0
  %1193 = vdwg.mxu0
  %1194 = vmatpush.bf16.msra.mxu0 %v789
  %1195 = vmatpush.bf16.msra.mxu0 %v777
  %1196 = vmatpush.bf16.msra.mxu0 %v765
  %1197 = vmatpush.bf16.msra.mxu0 %v753
  %1198 = vmatpush.bf16.msra.mxu0 %v741
  %1199 = vmatpush.bf16.msra.mxu0 %v729
  %1200 = vmatpush.bf16.msra.mxu0 %v717
  %1201 = vmatpush.bf16.msra.mxu0 %v705
  %1202 = vmatmul.bf16.gmra.mxu0 %v192
  %v1203 = vpop.f32.mrf.mxu0
  %v1204 = vadd.f32 0.0, %v1203
  %v1205 = vpop.f32.mrf.mxu0
  %1206 = vdwg.mxu0
  %1207 = vmatpush.bf16.msra.mxu0 0
  %1208 = vmatpush.bf16.msra.mxu0 0
  %1209 = vmatpush.bf16.msra.mxu0 %v861
  %1210 = vmatpush.bf16.msra.mxu0 %v849
  %1211 = vmatpush.bf16.msra.mxu0 %v837
  %1212 = vmatpush.bf16.msra.mxu0 %v825
  %1213 = vmatpush.bf16.msra.mxu0 %v813
  %1214 = vmatpush.bf16.msra.mxu0 %v801
  %1215 = vmatmul.bf16.gmra.mxu0 %v1036
  %v1216 = vpop.f32.mrf.mxu0
  %v1217 = vadd.f32 %v1204, %v1216
  %v1218 = vpop.f32.mrf.mxu0
  %1219 = vdwg.mxu0
  %1220 = vmatpush.bf16.msra.mxu0 %v790
  %1221 = vmatpush.bf16.msra.mxu0 %v778
  %1222 = vmatpush.bf16.msra.mxu0 %v766
  %1223 = vmatpush.bf16.msra.mxu0 %v754
  %1224 = vmatpush.bf16.msra.mxu0 %v742
  %1225 = vmatpush.bf16.msra.mxu0 %v730
  %1226 = vmatpush.bf16.msra.mxu0 %v718
  %1227 = vmatpush.bf16.msra.mxu0 %v706
  %1228 = vmatmul.bf16.gmra.mxu0 %v192
  %v1229 = vpop.f32.mrf.mxu0
  %v1230 = vadd.f32 0.0, %v1229
  %v1231 = vpop.f32.mrf.mxu0
  %1232 = vdwg.mxu0
  %1233 = vmatpush.bf16.msra.mxu0 0
  %1234 = vmatpush.bf16.msra.mxu0 0
  %1235 = vmatpush.bf16.msra.mxu0 %v862
  %1236 = vmatpush.bf16.msra.mxu0 %v850
  %1237 = vmatpush.bf16.msra.mxu0 %v838
  %1238 = vmatpush.bf16.msra.mxu0 %v826
  %1239 = vmatpush.bf16.msra.mxu0 %v814
  %1240 = vmatpush.bf16.msra.mxu0 %v802
  %1241 = vmatmul.bf16.gmra.mxu0 %v1036
  %v1242 = vpop.f32.mrf.mxu0
  %v1243 = vadd.f32 %v1230, %v1242
  %v1244 = vpop.f32.mrf.mxu0
  %1245 = vdwg.mxu0
  %1246 = vmatpush.bf16.msra.mxu0 %v791
  %1247 = vmatpush.bf16.msra.mxu0 %v779
  %1248 = vmatpush.bf16.msra.mxu0 %v767
  %1249 = vmatpush.bf16.msra.mxu0 %v755
  %1250 = vmatpush.bf16.msra.mxu0 %v743
  %1251 = vmatpush.bf16.msra.mxu0 %v731
  %1252 = vmatpush.bf16.msra.mxu0 %v719
  %1253 = vmatpush.bf16.msra.mxu0 %v707
  %1254 = vmatmul.bf16.gmra.mxu0 %v192
  %v1255 = vpop.f32.mrf.mxu0
  %v1256 = vadd.f32 0.0, %v1255
  %v1257 = vpop.f32.mrf.mxu0
  %1258 = vdwg.mxu0
  %1259 = vmatpush.bf16.msra.mxu0 0
  %1260 = vmatpush.bf16.msra.mxu0 0
  %1261 = vmatpush.bf16.msra.mxu0 %v863
  %1262 = vmatpush.bf16.msra.mxu0 %v851
  %1263 = vmatpush.bf16.msra.mxu0 %v839
  %1264 = vmatpush.bf16.msra.mxu0 %v827
  %1265 = vmatpush.bf16.msra.mxu0 %v815
  %1266 = vmatpush.bf16.msra.mxu0 %v803
  %1267 = vmatmul.bf16.gmra.mxu0 %v1036
  %v1268 = vpop.f32.mrf.mxu0
  %v1269 = vadd.f32 %v1256, %v1268
  %v1270 = vpop.f32.mrf.mxu0
  %1271 = vdwg.mxu0
  %1272 = vmatpush.bf16.msra.mxu0 %v792
  %1273 = vmatpush.bf16.msra.mxu0 %v780
  %1274 = vmatpush.bf16.msra.mxu0 %v768
  %1275 = vmatpush.bf16.msra.mxu0 %v756
  %1276 = vmatpush.bf16.msra.mxu0 %v744
  %1277 = vmatpush.bf16.msra.mxu0 %v732
  %1278 = vmatpush.bf16.msra.mxu0 %v720
  %1279 = vmatpush.bf16.msra.mxu0 %v708
  %1280 = vmatmul.bf16.gmra.mxu0 %v192
  %v1281 = vpop.f32.mrf.mxu0
  %v1282 = vadd.f32 0.0, %v1281
  %v1283 = vpop.f32.mrf.mxu0
  %1284 = vdwg.mxu0
  %1285 = vmatpush.bf16.msra.mxu0 0
  %1286 = vmatpush.bf16.msra.mxu0 0
  %1287 = vmatpush.bf16.msra.mxu0 %v864
  %1288 = vmatpush.bf16.msra.mxu0 %v852
  %1289 = vmatpush.bf16.msra.mxu0 %v840
  %1290 = vmatpush.bf16.msra.mxu0 %v828
  %1291 = vmatpush.bf16.msra.mxu0 %v816
  %1292 = vmatpush.bf16.msra.mxu0 %v804
  %1293 = vmatmul.bf16.gmra.mxu0 %v1036
  %v1294 = vpop.f32.mrf.mxu0
  %v1295 = vadd.f32 %v1282, %v1294
  %v1296 = vpop.f32.mrf.mxu0
  %1297 = vdwg.mxu0
  %1298 = vmatpush.bf16.msra.mxu0 %v793
  %1299 = vmatpush.bf16.msra.mxu0 %v781
  %1300 = vmatpush.bf16.msra.mxu0 %v769
  %1301 = vmatpush.bf16.msra.mxu0 %v757
  %1302 = vmatpush.bf16.msra.mxu0 %v745
  %1303 = vmatpush.bf16.msra.mxu0 %v733
  %1304 = vmatpush.bf16.msra.mxu0 %v721
  %1305 = vmatpush.bf16.msra.mxu0 %v709
  %1306 = vmatmul.bf16.gmra.mxu0 %v192
  %v1307 = vpop.f32.mrf.mxu0
  %v1308 = vadd.f32 0.0, %v1307
  %v1309 = vpop.f32.mrf.mxu0
  %1310 = vdwg.mxu0
  %1311 = vmatpush.bf16.msra.mxu0 0
  %1312 = vmatpush.bf16.msra.mxu0 0
  %1313 = vmatpush.bf16.msra.mxu0 %v865
  %1314 = vmatpush.bf16.msra.mxu0 %v853
  %1315 = vmatpush.bf16.msra.mxu0 %v841
  %1316 = vmatpush.bf16.msra.mxu0 %v829
  %1317 = vmatpush.bf16.msra.mxu0 %v817
  %1318 = vmatpush.bf16.msra.mxu0 %v805
  %1319 = vmatmul.bf16.gmra.mxu0 %v1036
  %v1320 = vpop.f32.mrf.mxu0
  %v1321 = vadd.f32 %v1308, %v1320
  %v1322 = vpop.f32.mrf.mxu0
  %1323 = vdwg.mxu0
  %1324 = vmatpush.bf16.msra.mxu0 %v794
  %1325 = vmatpush.bf16.msra.mxu0 %v782
  %1326 = vmatpush.bf16.msra.mxu0 %v770
  %1327 = vmatpush.bf16.msra.mxu0 %v758
  %1328 = vmatpush.bf16.msra.mxu0 %v746
  %1329 = vmatpush.bf16.msra.mxu0 %v734
  %1330 = vmatpush.bf16.msra.mxu0 %v722
  %1331 = vmatpush.bf16.msra.mxu0 %v710
  %1332 = vmatmul.bf16.gmra.mxu0 %v192
  %v1333 = vpop.f32.mrf.mxu0
  %v1334 = vadd.f32 0.0, %v1333
  %v1335 = vpop.f32.mrf.mxu0
  %1336 = vdwg.mxu0
  %1337 = vmatpush.bf16.msra.mxu0 0
  %1338 = vmatpush.bf16.msra.mxu0 0
  %1339 = vmatpush.bf16.msra.mxu0 %v866
  %1340 = vmatpush.bf16.msra.mxu0 %v854
  %1341 = vmatpush.bf16.msra.mxu0 %v842
  %1342 = vmatpush.bf16.msra.mxu0 %v830
  %1343 = vmatpush.bf16.msra.mxu0 %v818
  %1344 = vmatpush.bf16.msra.mxu0 %v806
  %1345 = vmatmul.bf16.gmra.mxu0 %v1036
  %v1346 = vpop.f32.mrf.mxu0
  %v1347 = vadd.f32 %v1334, %v1346
  %v1348 = vpop.f32.mrf.mxu0
  %1349 = vdwg.mxu0
  %v1350 = vld [vmem:[%s2] sm:$0xff]
  %v1351 = vld [vmem:[%s2 + $0x8] sm:$0xf]
  %v1354 = vperm.slane %v1350, 0
  %v1355 = vperm.slane %v1350, 1
  %v1356 = vperm.slane %v1350, 2
  %v1357 = vperm.slane %v1350, 3
  %v1358 = vperm.slane %v1350, 4
  %v1359 = vperm.slane %v1350, 5
  %v1360 = vperm.slane %v1350, 6
  %v1361 = vperm.slane %v1350, 7
  %v1362 = vperm.slane %v1351, 0
  %v1363 = vperm.slane %v1351, 1
  %v1364 = vperm.slane %v1351, 2
  %v1365 = vperm.slane %v1351, 3
  %v1378 = vadd.f32 %v1354, %v1061
  %v1379 = vadd.f32 %v1355, %v1087
  %v1380 = vadd.f32 %v1356, %v1113
  %v1381 = vadd.f32 %v1357, %v1139
  %v1382 = vadd.f32 %v1358, %v1165
  %v1383 = vadd.f32 %v1359, %v1191
  %v1384 = vadd.f32 %v1360, %v1217
  %v1385 = vadd.f32 %v1361, %v1243
  %v1386 = vadd.f32 %v1362, %v1269
  %v1387 = vadd.f32 %v1363, %v1295
  %v1388 = vadd.f32 %v1364, %v1321
  %v1389 = vadd.f32 %v1365, %v1347
  %v1390 = vld [vmem:[%s3] sm:$0xff]
  %v1391 = vld [vmem:[%s3 + $0x8] sm:$0xff]
  %v1392 = vld [vmem:[%s3 + $0x10] sm:$0xff]
  %v1393 = vld [vmem:[%s4] sm:$0xff]
  %v1394 = vld [vmem:[%s4 + $0x8] sm:$0xff]
  %v1395 = vld [vmem:[%s4 + $0x10] sm:$0xff]
  %v1396 = vld [vmem:[%s4 + $0x18] sm:$0xff]
  %v1397 = vld [vmem:[%s4 + $0x20] sm:$0xff]
  %v1398 = vld [vmem:[%s4 + $0x28] sm:$0xff]
  %v1399 = vld [vmem:[%s4 + $0x30] sm:$0xff]
  %v1400 = vld [vmem:[%s4 + $0x38] sm:$0xff]
  %v1401 = vld [vmem:[%s4 + $0x40] sm:$0xff]
  %v1402 = vld [vmem:[%s4 + $0x48] sm:$0xff]
  %v1403 = vld [vmem:[%s4 + $0x50] sm:$0xff]
  %v1404 = vld [vmem:[%s4 + $0x58] sm:$0xff]
  %vm1405 = vcmask 195584
  %v1407 = vsel %vm1405, %v1390, 0
  %v1410 = vsel %vm1405, %v1391, 0
  %v1413 = vsel %vm1405, %v1392, 0
  %1415 = vmatpush.msra.mxu0 0.0
  %1416 = vmatpush.msra.mxu0 0.0
  %1417 = vmatpush.msra.mxu0 0.0
  %1418 = vmatpush.msra.mxu0 0.0
  %1419 = vmatpush.msra.mxu0 0.0
  %1420 = vmatpush.msra.mxu0 0.0
  %1421 = vmatpush.msra.mxu0 0.0
  %1422 = vmatpush.msra.mxu0 0.0
  %1423 = vmatpush.msra.mxu0 0.0
  %1424 = vmatpush.msra.mxu0 0.0
  %1425 = vmatpush.msra.mxu0 0.0
  %1426 = vmatpush.msra.mxu0 0.0
  %1427 = vmatpush.msra.mxu0 0.0
  %1428 = vmatpush.msra.mxu0 %v1401
  %1429 = vmatpush.msra.mxu0 %v1397
  %1430 = vmatpush.msra.mxu0 %v1393
  %1431 = vmatmul.f32.gmra.mxu0 %v1407
  %v1432 = vpop.f32.mrf.mxu0
  %v1433 = vadd.f32 0.0, %v1432
  %1434 = vmatmul.f32.gmra.mxu0 %v1410
  %v1435 = vpop.f32.mrf.mxu0
  %v1436 = vadd.f32 0.0, %v1435
  %1437 = vmatmul.f32.gmra.mxu0 %v1413
  %v1438 = vpop.f32.mrf.mxu0
  %v1439 = vadd.f32 0.0, %v1438
  %1440 = vdwg.mxu0
  %1441 = vmatpush.msra.mxu0 0.0
  %1442 = vmatpush.msra.mxu0 0.0
  %1443 = vmatpush.msra.mxu0 0.0
  %1444 = vmatpush.msra.mxu0 0.0
  %1445 = vmatpush.msra.mxu0 0.0
  %1446 = vmatpush.msra.mxu0 0.0
  %1447 = vmatpush.msra.mxu0 0.0
  %1448 = vmatpush.msra.mxu0 0.0
  %1449 = vmatpush.msra.mxu0 0.0
  %1450 = vmatpush.msra.mxu0 0.0
  %1451 = vmatpush.msra.mxu0 0.0
  %1452 = vmatpush.msra.mxu0 0.0
  %1453 = vmatpush.msra.mxu0 0.0
  %1454 = vmatpush.msra.mxu0 %v1402
  %1455 = vmatpush.msra.mxu0 %v1398
  %1456 = vmatpush.msra.mxu0 %v1394
  %1457 = vmatmul.f32.gmra.mxu0 %v1407
  %v1458 = vpop.f32.mrf.mxu0
  %v1459 = vadd.f32 0.0, %v1458
  %1460 = vmatmul.f32.gmra.mxu0 %v1410
  %v1461 = vpop.f32.mrf.mxu0
  %v1462 = vadd.f32 0.0, %v1461
  %1463 = vmatmul.f32.gmra.mxu0 %v1413
  %v1464 = vpop.f32.mrf.mxu0
  %v1465 = vadd.f32 0.0, %v1464
  %1466 = vdwg.mxu0
  %1467 = vmatpush.msra.mxu0 0.0
  %1468 = vmatpush.msra.mxu0 0.0
  %1469 = vmatpush.msra.mxu0 0.0
  %1470 = vmatpush.msra.mxu0 0.0
  %1471 = vmatpush.msra.mxu0 0.0
  %1472 = vmatpush.msra.mxu0 0.0
  %1473 = vmatpush.msra.mxu0 0.0
  %1474 = vmatpush.msra.mxu0 0.0
  %1475 = vmatpush.msra.mxu0 0.0
  %1476 = vmatpush.msra.mxu0 0.0
  %1477 = vmatpush.msra.mxu0 0.0
  %1478 = vmatpush.msra.mxu0 0.0
  %1479 = vmatpush.msra.mxu0 0.0
  %1480 = vmatpush.msra.mxu0 %v1403
  %1481 = vmatpush.msra.mxu0 %v1399
  %1482 = vmatpush.msra.mxu0 %v1395
  %1483 = vmatmul.f32.gmra.mxu0 %v1407
  %v1484 = vpop.f32.mrf.mxu0
  %v1485 = vadd.f32 0.0, %v1484
  %1486 = vmatmul.f32.gmra.mxu0 %v1410
  %v1487 = vpop.f32.mrf.mxu0
  %v1488 = vadd.f32 0.0, %v1487
  %1489 = vmatmul.f32.gmra.mxu0 %v1413
  %v1490 = vpop.f32.mrf.mxu0
  %v1491 = vadd.f32 0.0, %v1490
  %1492 = vdwg.mxu0
  %1493 = vmatpush.msra.mxu0 0.0
  %1494 = vmatpush.msra.mxu0 0.0
  %1495 = vmatpush.msra.mxu0 0.0
  %1496 = vmatpush.msra.mxu0 0.0
  %1497 = vmatpush.msra.mxu0 0.0
  %1498 = vmatpush.msra.mxu0 0.0
  %1499 = vmatpush.msra.mxu0 0.0
  %1500 = vmatpush.msra.mxu0 0.0
  %1501 = vmatpush.msra.mxu0 0.0
  %1502 = vmatpush.msra.mxu0 0.0
  %1503 = vmatpush.msra.mxu0 0.0
  %1504 = vmatpush.msra.mxu0 0.0
  %1505 = vmatpush.msra.mxu0 0.0
  %1506 = vmatpush.msra.mxu0 %v1404
  %1507 = vmatpush.msra.mxu0 %v1400
  %1508 = vmatpush.msra.mxu0 %v1396
  %1509 = vmatmul.f32.gmra.mxu0 %v1407
  %v1510 = vpop.f32.mrf.mxu0
  %v1511 = vadd.f32 0.0, %v1510
  %1512 = vmatmul.f32.gmra.mxu0 %v1410
  %v1513 = vpop.f32.mrf.mxu0
  %v1514 = vadd.f32 0.0, %v1513
  %1515 = vmatmul.f32.gmra.mxu0 %v1413
  %v1516 = vpop.f32.mrf.mxu0
  %v1517 = vadd.f32 0.0, %v1516
  %1518 = vdwg.mxu0
  %v1519 = vmul.f32 %v1433, %v1378
  %v1520 = vmul.f32 %v1459, %v1379
  %v1521 = vmul.f32 %v1485, %v1380
  %v1522 = vmul.f32 %v1511, %v1381
  %v1527 = vrot.slane %v1382, 6
  %v1528 = vrot.slane %v1383, 6
  %v1529 = vrot.slane %v1384, 6
  %v1530 = vrot.slane %v1385, 6
  %v1535 = vmul.f32 %v1433, %v1527
  %v1536 = vmul.f32 %v1459, %v1528
  %v1537 = vmul.f32 %v1485, %v1529
  %v1538 = vmul.f32 %v1511, %v1530
  %v1543 = vrot.slane %v1535, 2
  %v1544 = vrot.slane %v1536, 2
  %v1545 = vrot.slane %v1537, 2
  %v1546 = vrot.slane %v1538, 2
  %v1551 = vadd.f32 %v1519, %v1543
  %v1552 = vadd.f32 %v1520, %v1544
  %v1553 = vadd.f32 %v1521, %v1545
  %v1554 = vadd.f32 %v1522, %v1546
  %v1559 = vrot.slane %v1386, 4
  %v1560 = vrot.slane %v1387, 4
  %v1561 = vrot.slane %v1388, 4
  %v1562 = vrot.slane %v1389, 4
  %v1567 = vmul.f32 %v1433, %v1559
  %v1568 = vmul.f32 %v1459, %v1560
  %v1569 = vmul.f32 %v1485, %v1561
  %v1570 = vmul.f32 %v1511, %v1562
  %v1575 = vrot.slane %v1567, 4
  %v1576 = vrot.slane %v1568, 4
  %v1577 = vrot.slane %v1569, 4
  %v1578 = vrot.slane %v1570, 4
  %v1583 = vadd.f32 %v1551, %v1575
  %v1584 = vadd.f32 %v1552, %v1576
  %v1585 = vadd.f32 %v1553, %v1577
  %v1586 = vadd.f32 %v1554, %v1578
  %v1591 = vrot.slane %v1433, 6
  %v1592 = vrot.slane %v1459, 6
  %v1593 = vrot.slane %v1485, 6
  %v1594 = vrot.slane %v1511, 6
  %v1599 = vadd.f32 %v1583, %v1591
  %v1600 = vadd.f32 %v1584, %v1592
  %v1601 = vadd.f32 %v1585, %v1593
  %v1602 = vadd.f32 %v1586, %v1594
  %v1607 = vrot.slane %v1600, 6
  %v1608 = vrot.slane %v1601, 4
  %v1609 = vrot.slane %v1602, 2
  %vm1610 = vcmask 1041408
  %v1611 = vsel %vm1610, %v1599, %v1607
  %vm1612 = vcmask 1045508
  %v1613 = vsel %vm1612, %v1608, %v1609
  %vm1614 = vcmask 1043456
  %v1615 = vsel %vm1614, %v1611, %v1613
  %1617 = vst [vmem:[%s5] sm:$0xff] %v1615
  %v1618 = vmul.f32 %v1436, %v1378
  %v1619 = vmul.f32 %v1462, %v1379
  %v1620 = vmul.f32 %v1488, %v1380
  %v1621 = vmul.f32 %v1514, %v1381
  %v1622 = vmul.f32 %v1436, %v1527
  %v1623 = vmul.f32 %v1462, %v1528
  %v1624 = vmul.f32 %v1488, %v1529
  %v1625 = vmul.f32 %v1514, %v1530
  %v1630 = vrot.slane %v1622, 2
  %v1631 = vrot.slane %v1623, 2
  %v1632 = vrot.slane %v1624, 2
  %v1633 = vrot.slane %v1625, 2
  %v1638 = vadd.f32 %v1618, %v1630
  %v1639 = vadd.f32 %v1619, %v1631
  %v1640 = vadd.f32 %v1620, %v1632
  %v1641 = vadd.f32 %v1621, %v1633
  %v1642 = vmul.f32 %v1436, %v1559
  %v1643 = vmul.f32 %v1462, %v1560
  %v1644 = vmul.f32 %v1488, %v1561
  %v1645 = vmul.f32 %v1514, %v1562
  %v1650 = vrot.slane %v1642, 4
  %v1651 = vrot.slane %v1643, 4
  %v1652 = vrot.slane %v1644, 4
  %v1653 = vrot.slane %v1645, 4
  %v1658 = vadd.f32 %v1638, %v1650
  %v1659 = vadd.f32 %v1639, %v1651
  %v1660 = vadd.f32 %v1640, %v1652
  %v1661 = vadd.f32 %v1641, %v1653
  %v1666 = vrot.slane %v1436, 6
  %v1667 = vrot.slane %v1462, 6
  %v1668 = vrot.slane %v1488, 6
  %v1669 = vrot.slane %v1514, 6
  %v1674 = vadd.f32 %v1658, %v1666
  %v1675 = vadd.f32 %v1659, %v1667
  %v1676 = vadd.f32 %v1660, %v1668
  %v1677 = vadd.f32 %v1661, %v1669
  %v1682 = vrot.slane %v1675, 6
  %v1683 = vrot.slane %v1676, 4
  %v1684 = vrot.slane %v1677, 2
  %v1685 = vsel %vm1610, %v1674, %v1682
  %v1686 = vsel %vm1612, %v1683, %v1684
  %v1687 = vsel %vm1614, %v1685, %v1686
  %1689 = vst [vmem:[%s5 + $0x8] sm:$0xff] %v1687
  %v1690 = vmul.f32 %v1439, %v1378
  %v1691 = vmul.f32 %v1465, %v1379
  %v1692 = vmul.f32 %v1491, %v1380
  %v1693 = vmul.f32 %v1517, %v1381
  %v1694 = vmul.f32 %v1439, %v1527
  %v1695 = vmul.f32 %v1465, %v1528
  %v1696 = vmul.f32 %v1491, %v1529
  %v1697 = vmul.f32 %v1517, %v1530
  %v1702 = vrot.slane %v1694, 2
  %v1703 = vrot.slane %v1695, 2
  %v1704 = vrot.slane %v1696, 2
  %v1705 = vrot.slane %v1697, 2
  %v1710 = vadd.f32 %v1690, %v1702
  %v1711 = vadd.f32 %v1691, %v1703
  %v1712 = vadd.f32 %v1692, %v1704
  %v1713 = vadd.f32 %v1693, %v1705
  %v1714 = vmul.f32 %v1439, %v1559
  %v1715 = vmul.f32 %v1465, %v1560
  %v1716 = vmul.f32 %v1491, %v1561
  %v1717 = vmul.f32 %v1517, %v1562
  %v1722 = vrot.slane %v1714, 4
  %v1723 = vrot.slane %v1715, 4
  %v1724 = vrot.slane %v1716, 4
  %v1725 = vrot.slane %v1717, 4
  %v1730 = vadd.f32 %v1710, %v1722
  %v1731 = vadd.f32 %v1711, %v1723
  %v1732 = vadd.f32 %v1712, %v1724
  %v1733 = vadd.f32 %v1713, %v1725
  %v1738 = vrot.slane %v1439, 6
  %v1739 = vrot.slane %v1465, 6
  %v1740 = vrot.slane %v1491, 6
  %v1741 = vrot.slane %v1517, 6
  %v1746 = vadd.f32 %v1730, %v1738
  %v1747 = vadd.f32 %v1731, %v1739
  %v1748 = vadd.f32 %v1732, %v1740
  %v1749 = vadd.f32 %v1733, %v1741
  %v1754 = vrot.slane %v1747, 6
  %v1755 = vrot.slane %v1748, 4
  %v1756 = vrot.slane %v1749, 2
  %v1757 = vsel %vm1610, %v1746, %v1754
  %v1758 = vsel %vm1612, %v1755, %v1756
  %v1759 = vsel %vm1614, %v1757, %v1758
  %1761 = vst [vmem:[%s5 + $0x10] sm:$0xff] %v1759
  // Predicated region
  $region22: #{_lambda_.1} parent=0 // pred_check
    _
  $region23: #{_lambda_.1} parent=0 // pred_check_branch
    %1763 = sbr.rel (0) target = $region25
  $region24: #{_lambda_.1} parent=0 // pred_region
    _
  $region25: #{_lambda_.1} parent=0 // pred_fallthru
    _
  // Predicated region
  $region26: #{_lambda_.1} parent=0 // pred_check
    _
  $region27: #{_lambda_.1} parent=0 // pred_check_branch
    %1765 = sbr.rel (0) target = $region29
  $region28: #{_lambda_.1} parent=0 // pred_region
    _
  $region29: #{_lambda_.1} parent=0 // pred_fallthru
    _

</llo_original>
